<compile_context>
chip_gen: v7x
topology: tpu7x:2x2x1
jax: 0.10.0
libtpu: 0.0.40
codegen_flags: <defaults>
</compile_context>

<pallas_src>
import jax
import jax.numpy as jnp
from jax import lax
from jax.experimental import pallas as pl
from jax.experimental.pallas import tpu as pltpu


def _mlp_kernel(x_ref, w1_ref, b1_ref, w2_ref, b2_ref, w3_ref, b3_ref, w4_ref,
                o_ref):
    # x arrives in native layout (tb, in_dim); contract its LAST dim against
    # w1's last dim (a trans_b matmul) so the result is already transposed:
    # (in_dim_out, tb) with batch on the lane axis.
    x = x_ref[...]                                                   # (tb, in_dim)

    # Layer 1: Linear(in_dim, in_dim) + ReLU   -> (in_dim, tb)
    h = lax.dot_general(w1_ref[...], x, (((1,), (1,)), ((), ())),
                        preferred_element_type=jnp.float32)
    h = jnp.maximum(h + b1_ref[...], 0.0)

    # Layer 2: Linear(in_dim, a) + ReLU        -> (a, tb)
    h = jnp.dot(w2_ref[...], h, preferred_element_type=jnp.float32)
    h = jnp.maximum(h + b2_ref[...], 0.0)

    # Layer 3: Linear(a, a) + ReLU             -> (a, tb)
    h = jnp.dot(w3_ref[...], h, preferred_element_type=jnp.float32)
    h = jnp.maximum(h + b3_ref[...], 0.0)

    # Layer 4: Linear(a, out_dim, bias=False)  -> (out_dim, tb)
    y = jnp.dot(w4_ref[...], h, preferred_element_type=jnp.float32)

    o_ref[...] = y.astype(o_ref.dtype)                               # lane-dense store


def _round_up(x, m):
    return ((x + m - 1) // m) * m


def _num_tensorcores():
    """Best-effort detection of TensorCores per chip (v7x has 2, v5e/v6e 1)."""
    try:
        kind = jax.devices()[0].device_kind.lower()
    except Exception:
        return 1
    return 2 if ("v7" in kind or "7x" in kind) else 1


def _xla_fast_path(x, w1, b1, w2, b2, w3, b3, w4):
    h = jnp.maximum(x @ w1.T + b1.T, 0.0)
    h = jnp.maximum(h @ w2.T + b2.T, 0.0)
    h = jnp.maximum(h @ w3.T + b3.T, 0.0)
    return h @ w4.T


def model_simple_linear_forward(x, params, *, block_batch=4096,
                                small_batch_threshold=512,
                                force_pallas=False):
    """x: (B, in_dim) float32.  params: PyTorch-layout weights/biases.

    Weights are (out_features, in_features); biases are (out_features, 1).
    Returns (B, out_dim), matching nn.Sequential(...)(x).
    """
    w1, b1, w2, b2, w3, b3, w4 = (
        params["w1"], params["b1"], params["w2"], params["b2"],
        params["w3"], params["b3"], params["w4"],
    )
    B, in_dim = x.shape
    out_dim = w4.shape[0]

    # Small-batch fast path: launch overhead dominates; a fused XLA MLP wins.
    if (not force_pallas) and B < small_batch_threshold:
        return _xla_fast_path(x, w1, b1, w2, b2, w3, b3, w4)

    # --- Tile selection (batch sits on the 128-lane axis inside the kernel).
    b_pad = _round_up(B, 128)                       # aligned batch extent
    tb_cap = max(128, (min(block_batch, 8192) // 128) * 128)
    if _num_tensorcores() >= 2 and b_pad >= 256:
        # Keep >=2 grid steps so the "parallel" axis shards across both TCs.
        tb = min(tb_cap, _round_up(b_pad // 2, 128))
    else:
        # Single TC: one step when it fits (extra steps are pure overhead).
        tb = min(tb_cap, b_pad)

    # Pad batch rows only when B isn't 128-aligned (tiny copy; common large-B
    # case is a no-op).  No transpose of x in the wrapper.
    x_in = x if b_pad == B else jnp.pad(x, ((0, b_pad - B), (0, 0)))

    grid = (pl.cdiv(b_pad, tb),)

    def resident(shape):
        # Same block every grid step -> DMA'd once, stays resident in VMEM.
        return pl.BlockSpec(shape, lambda i: (0, 0))

    y_t = pl.pallas_call(
        _mlp_kernel,
        out_shape=jax.ShapeDtypeStruct((out_dim, b_pad), x.dtype),
        grid=grid,
        in_specs=[
            pl.BlockSpec((tb, in_dim), lambda i: (i, 0)),   # x tiles (pipelined)
            resident(w1.shape), resident(b1.shape),
            resident(w2.shape), resident(b2.shape),
            resident(w3.shape), resident(b3.shape),
            resident(w4.shape),
        ],
        out_specs=pl.BlockSpec((out_dim, tb), lambda i: (0, i)),
        compiler_params=pltpu.CompilerParams(
            dimension_semantics=("parallel",)),             # megacore-shardable
    )(x_in, w1, b1, w2, b2, w3, b3, w4)

    y_t = y_t if b_pad == B else y_t[:, :B]
    return y_t.T                                            # (B, out_dim)


def init_params(key, in_dim=10, out_dim=1, dtype=jnp.float32):
    """Deterministic synthetic init matching the PyTorch module's shapes.

    Weights stay in PyTorch's (out_features, in_features) layout; biases are
    stored as (out_features, 1) columns (broadcast over lanes in-kernel).
    """
    a = in_dim // 2
    keys = jax.random.split(key, 7)

    def uinit(k, fan_in, shape):
        bound = 1.0 / jnp.sqrt(fan_in)
        return jax.random.uniform(k, shape, dtype, minval=-bound, maxval=bound)

    return {
        "w1": uinit(keys[0], in_dim, (in_dim, in_dim)),
        "b1": uinit(keys[1], in_dim, (in_dim, 1)),
        "w2": uinit(keys[2], in_dim, (a, in_dim)),
        "b2": uinit(keys[3], in_dim, (a, 1)),
        "w3": uinit(keys[4], a, (a, a)),
        "b3": uinit(keys[5], a, (a, 1)),
        "w4": uinit(keys[6], a, (out_dim, a)),
    }


def reference_forward(x, params):
    h = jnp.maximum(x @ params["w1"].T + params["b1"].T, 0.0)
    h = jnp.maximum(h @ params["w2"].T + params["b2"].T, 0.0)
    h = jnp.maximum(h @ params["w3"].T + params["b3"].T, 0.0)
    return h @ params["w4"].T


if __name__ == "__main__":
    key = jax.random.PRNGKey(0)
    k_param, k_x1, k_x2 = jax.random.split(key, 3)

    in_dim, out_dim = 10, 1
    params = init_params(k_param, in_dim=in_dim, out_dim=out_dim)

    def check(y, y_ref, tag):
        assert y.shape == y_ref.shape, (tag, y.shape, y_ref.shape)
        assert jnp.allclose(y, y_ref, atol=1e-5, rtol=1e-5), f"mismatch ({tag})"

    # Case 1: batch large enough to take the Pallas path (generation-aware tb).
    batch = 1024
    x = jax.random.normal(k_x1, (batch, in_dim), dtype=jnp.float32)
    y = jax.block_until_ready(model_simple_linear_forward(x, params))
    check(y, reference_forward(x, params), "B=1024 pallas")

    # Case 2: same batch, forced small tile -> multi-step grid exercised.
    y_multi = jax.block_until_ready(
        model_simple_linear_forward(x, params, block_batch=256))
    check(y_multi, reference_forward(x, params), "B=1024 pallas tb=256")

    # Case 3: tiny batch -> fused XLA fast path.
    batch_small = 8
    x_s = jax.random.normal(k_x2, (batch_small, in_dim), dtype=jnp.float32)
    y_s = jax.block_until_ready(model_simple_linear_forward(x_s, params))
    check(y_s, reference_forward(x_s, params), "B=8 fast path")

    # Case 4: tiny batch forced through the Pallas kernel (pad-to-128 path).
    y_sf = jax.block_until_ready(
        model_simple_linear_forward(x_s, params, force_pallas=True))
    check(y_sf, reference_forward(x_s, params), "B=8 pallas forced")

    print("KERNEL_OK")
</pallas_src>

<mosaic_0001>
module attributes {stable_mosaic.version = 11 : i64} {
  func.func @_mlp_kernel(%arg0: i32, %arg1: memref<1024x10xf32, #tpu.memory_space<vmem>>, %arg2: memref<10x10xf32, #tpu.memory_space<vmem>>, %arg3: memref<10x1xf32, #tpu.memory_space<vmem>>, %arg4: memref<5x10xf32, #tpu.memory_space<vmem>>, %arg5: memref<5x1xf32, #tpu.memory_space<vmem>>, %arg6: memref<5x5xf32, #tpu.memory_space<vmem>>, %arg7: memref<5x1xf32, #tpu.memory_space<vmem>>, %arg8: memref<1x5xf32, #tpu.memory_space<vmem>>, %arg9: memref<1x1024xf32, #tpu.memory_space<vmem>>) attributes {dimension_semantics = [#tpu.dimension_semantics<parallel>], iteration_bounds = array<i64: 1>, scalar_prefetch = 0 : i64, scratch_operands = 0 : i64, tpu.core_type = #tpu.core_type<tc>, window_params = [{transform_indices = @transform_0, window_bounds = array<i64: 1024, 10>}, {pipeline_mode = #tpu.pipeline_mode<synchronous>, transform_indices = @transform_1, window_bounds = array<i64: 10, 10>}, {pipeline_mode = #tpu.pipeline_mode<synchronous>, transform_indices = @transform_2, window_bounds = array<i64: 10, 1>}, {pipeline_mode = #tpu.pipeline_mode<synchronous>, transform_indices = @transform_3, window_bounds = array<i64: 5, 10>}, {pipeline_mode = #tpu.pipeline_mode<synchronous>, transform_indices = @transform_4, window_bounds = array<i64: 5, 1>}, {pipeline_mode = #tpu.pipeline_mode<synchronous>, transform_indices = @transform_5, window_bounds = array<i64: 5, 5>}, {pipeline_mode = #tpu.pipeline_mode<synchronous>, transform_indices = @transform_6, window_bounds = array<i64: 5, 1>}, {pipeline_mode = #tpu.pipeline_mode<synchronous>, transform_indices = @transform_7, window_bounds = array<i64: 1, 5>}, {transform_indices = @transform_8, window_bounds = array<i64: 1, 1024>}]} {
    %c0 = arith.constant 0 : index
    %c0_0 = arith.constant 0 : index
    %0 = vector.load %arg1[%c0, %c0_0] : memref<1024x10xf32, #tpu.memory_space<vmem>>, vector<1024x10xf32>
    %c0_1 = arith.constant 0 : index
    %c0_2 = arith.constant 0 : index
    %1 = vector.load %arg2[%c0_1, %c0_2] : memref<10x10xf32, #tpu.memory_space<vmem>>, vector<10x10xf32>
    %cst = arith.constant dense<0.000000e+00> : vector<10x1024xf32>
    %2 = tpu.matmul %1, %0, %cst {dimension_numbers = #tpu.dot_dimension_numbers<[1], [1], [0], [0], [0, 0, 1, 0], [], []>} : vector<10x10xf32>, vector<1024x10xf32>, vector<10x1024xf32> -> vector<10x1024xf32>
    %c0_3 = arith.constant 0 : index
    %c0_4 = arith.constant 0 : index
    %3 = vector.load %arg3[%c0_3, %c0_4] : memref<10x1xf32, #tpu.memory_space<vmem>>, vector<10x1xf32>
    %4 = vector.broadcast %3 : vector<10x1xf32> to vector<10x1024xf32>
    %5 = arith.addf %2, %4 : vector<10x1024xf32>
    %cst_5 = arith.constant 0.000000e+00 : f32
    %6 = vector.broadcast %cst_5 : f32 to vector<10x1024xf32>
    %7 = arith.maximumf %5, %6 : vector<10x1024xf32>
    %c0_6 = arith.constant 0 : index
    %c0_7 = arith.constant 0 : index
    %8 = vector.load %arg4[%c0_6, %c0_7] : memref<5x10xf32, #tpu.memory_space<vmem>>, vector<5x10xf32>
    %cst_8 = arith.constant dense<0.000000e+00> : vector<5x1024xf32>
    %9 = tpu.matmul %8, %7, %cst_8 {dimension_numbers = #tpu.dot_dimension_numbers<[1], [0], [0], [1], [0, 0, 1, 1], [], []>} : vector<5x10xf32>, vector<10x1024xf32>, vector<5x1024xf32> -> vector<5x1024xf32>
    %c0_9 = arith.constant 0 : index
    %c0_10 = arith.constant 0 : index
    %10 = vector.load %arg5[%c0_9, %c0_10] : memref<5x1xf32, #tpu.memory_space<vmem>>, vector<5x1xf32>
    %11 = vector.broadcast %10 : vector<5x1xf32> to vector<5x1024xf32>
    %12 = arith.addf %9, %11 : vector<5x1024xf32>
    %cst_11 = arith.constant 0.000000e+00 : f32
    %13 = vector.broadcast %cst_11 : f32 to vector<5x1024xf32>
    %14 = arith.maximumf %12, %13 : vector<5x1024xf32>
    %c0_12 = arith.constant 0 : index
    %c0_13 = arith.constant 0 : index
    %15 = vector.load %arg6[%c0_12, %c0_13] : memref<5x5xf32, #tpu.memory_space<vmem>>, vector<5x5xf32>
    %cst_14 = arith.constant dense<0.000000e+00> : vector<5x1024xf32>
    %16 = tpu.matmul %15, %14, %cst_14 {dimension_numbers = #tpu.dot_dimension_numbers<[1], [0], [0], [1], [0, 0, 1, 1], [], []>} : vector<5x5xf32>, vector<5x1024xf32>, vector<5x1024xf32> -> vector<5x1024xf32>
    %c0_15 = arith.constant 0 : index
    %c0_16 = arith.constant 0 : index
    %17 = vector.load %arg7[%c0_15, %c0_16] : memref<5x1xf32, #tpu.memory_space<vmem>>, vector<5x1xf32>
    %18 = vector.broadcast %17 : vector<5x1xf32> to vector<5x1024xf32>
    %19 = arith.addf %16, %18 : vector<5x1024xf32>
    %cst_17 = arith.constant 0.000000e+00 : f32
    %20 = vector.broadcast %cst_17 : f32 to vector<5x1024xf32>
    %21 = arith.maximumf %19, %20 : vector<5x1024xf32>
    %c0_18 = arith.constant 0 : index
    %c0_19 = arith.constant 0 : index
    %22 = vector.load %arg8[%c0_18, %c0_19] : memref<1x5xf32, #tpu.memory_space<vmem>>, vector<1x5xf32>
    %cst_20 = arith.constant dense<0.000000e+00> : vector<1x1024xf32>
    %23 = tpu.matmul %22, %21, %cst_20 {dimension_numbers = #tpu.dot_dimension_numbers<[1], [0], [0], [1], [0, 0, 1, 1], [], []>} : vector<1x5xf32>, vector<5x1024xf32>, vector<1x1024xf32> -> vector<1x1024xf32>
    %c0_21 = arith.constant 0 : index
    %c0_22 = arith.constant 0 : index
    %24 = vector.load %arg9[%c0_21, %c0_22] : memref<1x1024xf32, #tpu.memory_space<vmem>>, vector<1x1024xf32>
    tpu.vector_store %arg9[%c0_21, %c0_22], %23 {strides = array<i32>} : memref<1x1024xf32, #tpu.memory_space<vmem>>, vector<1x1024xf32>,
    return
  }
  func.func @transform_0(%arg0: i32) -> (i32, i32) {
    %c0_i32 = arith.constant 0 : i32
    %c0_i32_0 = arith.constant 0 : i32
    return %arg0, %c0_i32 : i32, i32
  }
  func.func @transform_1(%arg0: i32) -> (i32, i32) {
    %c0_i32 = arith.constant 0 : i32
    %c0_i32_0 = arith.constant 0 : i32
    %c0_i32_1 = arith.constant 0 : i32
    return %c0_i32, %c0_i32_0 : i32, i32
  }
  func.func @transform_2(%arg0: i32) -> (i32, i32) {
    %c0_i32 = arith.constant 0 : i32
    %c0_i32_0 = arith.constant 0 : i32
    %c0_i32_1 = arith.constant 0 : i32
    return %c0_i32, %c0_i32_0 : i32, i32
  }
  func.func @transform_3(%arg0: i32) -> (i32, i32) {
    %c0_i32 = arith.constant 0 : i32
    %c0_i32_0 = arith.constant 0 : i32
    %c0_i32_1 = arith.constant 0 : i32
    return %c0_i32, %c0_i32_0 : i32, i32
  }
  func.func @transform_4(%arg0: i32) -> (i32, i32) {
    %c0_i32 = arith.constant 0 : i32
    %c0_i32_0 = arith.constant 0 : i32
    %c0_i32_1 = arith.constant 0 : i32
    return %c0_i32, %c0_i32_0 : i32, i32
  }
  func.func @transform_5(%arg0: i32) -> (i32, i32) {
    %c0_i32 = arith.constant 0 : i32
    %c0_i32_0 = arith.constant 0 : i32
    %c0_i32_1 = arith.constant 0 : i32
    return %c0_i32, %c0_i32_0 : i32, i32
  }
  func.func @transform_6(%arg0: i32) -> (i32, i32) {
    %c0_i32 = arith.constant 0 : i32
    %c0_i32_0 = arith.constant 0 : i32
    %c0_i32_1 = arith.constant 0 : i32
    return %c0_i32, %c0_i32_0 : i32, i32
  }
  func.func @transform_7(%arg0: i32) -> (i32, i32) {
    %c0_i32 = arith.constant 0 : i32
    %c0_i32_0 = arith.constant 0 : i32
    %c0_i32_1 = arith.constant 0 : i32
    return %c0_i32, %c0_i32_0 : i32, i32
  }
  func.func @transform_8(%arg0: i32) -> (i32, i32) {
    %c0_i32 = arith.constant 0 : i32
    %c0_i32_0 = arith.constant 0 : i32
    return %c0_i32, %arg0 : i32, i32
  }
}

</mosaic_0001>

<llo_original>
// kernel: tpu_custom_call.1
$region0: #{tpu_custom_call.1}
  #allocation0 [shape = 'u32[]', space=smem, size = 0x4, offset = 0x4, fixed_abs, tag = 'smem constant byte address 0x4 - core index']
  #allocation1 [shape = 'u32[144,128]{1,0:T(1,128)}', space=vmem, size = 0x12000, scoped, tag = 'internal scratch']
  %s0 = inlined_call_operand.vmem [shape: f32[1024,10], index: 0, kind: input, shape index: {}]
  %s1 = inlined_call_operand.vmem [shape: f32[10,10], index: 1, kind: input, shape index: {}]
  %s2 = inlined_call_operand.vmem [shape: f32[10,1], index: 2, kind: input, shape index: {}]
  %s3 = inlined_call_operand.vmem [shape: f32[5,10], index: 3, kind: input, shape index: {}]
  %s4 = inlined_call_operand.vmem [shape: f32[5,1], index: 4, kind: input, shape index: {}]
  %s5 = inlined_call_operand.vmem [shape: f32[5,5], index: 5, kind: input, shape index: {}]
  %s6 = inlined_call_operand.vmem [shape: f32[5,1], index: 6, kind: input, shape index: {}]
  %s7 = inlined_call_operand.vmem [shape: f32[1,5], index: 7, kind: input, shape index: {}]
  %s8 = inlined_call_operand.hbm [shape: f32[1,1024], index: 8, kind: output, shape index: {}]
  %s9 = sld [smem:[#allocation0]]
  $region42: #{tpu_custom_call.1} parent=0
    _
  %s11 = ssub.s32 1, %s9
  %s12 = scalar_select 0, %s11, %s9
  $region1: #{tpu_custom_call.1} parent=0
    #allocation2 [shape = 'u8[4096]{0}', space=vmem, size = 0x1000, scoped, tag = 'output window, operand 0, single buffered']
    #allocation3 [shape = 's32[1]{0}', space=sflag, size = 0x4, scoped, tag = 'scoped memory for tpu_custom_call.1']
    %13 = vsyncpa [#allocation3], 0
    // Predicated region
    $region2: #{tpu_custom_call.1} parent=1 // pred_check
      _
    $region3: #{tpu_custom_call.1} parent=1 // pred_check_branch
      %15 = sbr.rel (0) target = $region5
    $region4: #{tpu_custom_call.1} parent=1 // pred_region
      _
    $region5: #{tpu_custom_call.1} parent=1 // pred_fallthru
      _
    // Predicated region
    $region6: #{tpu_custom_call.1} parent=1 // pred_check
      _
    $region7: #{tpu_custom_call.1} parent=1 // pred_check_branch
      %17 = sbr.rel (0) target = $region9
    $region8: #{tpu_custom_call.1} parent=1 // pred_region
      _
    $region9: #{tpu_custom_call.1} parent=1 // pred_fallthru
      _
    // Predicated region
    $region10: #{tpu_custom_call.1} parent=1 // pred_check
      _
    $region11: #{tpu_custom_call.1} parent=1 // pred_check_branch
      %19 = sbr.rel (0) target = $region13
    $region12: #{tpu_custom_call.1} parent=1 // pred_region
      _
    $region13: #{tpu_custom_call.1} parent=1 // pred_fallthru
      _
    // Predicated region
    $region14: #{tpu_custom_call.1} parent=1 // pred_check
      _
    $region15: #{tpu_custom_call.1} parent=1 // pred_check_branch
      %21 = sbr.rel (0) target = $region17
    $region16: #{tpu_custom_call.1} parent=1 // pred_region
      _
    $region17: #{tpu_custom_call.1} parent=1 // pred_fallthru
      _
    // Predicated region
    $region18: #{tpu_custom_call.1} parent=1 // pred_check
      _
    $region19: #{tpu_custom_call.1} parent=1 // pred_check_branch
      %23 = sbr.rel (0) target = $region21
    $region20: #{tpu_custom_call.1} parent=1 // pred_region
      _
    $region21: #{tpu_custom_call.1} parent=1 // pred_fallthru
      _
    // Predicated region
    $region22: #{tpu_custom_call.1} parent=1 // pred_check
      _
    $region23: #{tpu_custom_call.1} parent=1 // pred_check_branch
      %25 = sbr.rel (0) target = $region25
    $region24: #{tpu_custom_call.1} parent=1 // pred_region
      _
    $region25: #{tpu_custom_call.1} parent=1 // pred_fallthru
      _
    // Predicated region
    $region26: #{tpu_custom_call.1} parent=1 // pred_check
      _
    $region27: #{tpu_custom_call.1} parent=1 // pred_check_branch
      %27 = sbr.rel (0) target = $region29
    $region28: #{tpu_custom_call.1} parent=1 // pred_region
      _
    $region29: #{tpu_custom_call.1} parent=1 // pred_fallthru
      _
    // Predicated region
    $region30: #{tpu_custom_call.1} parent=1 // pred_check
      _
    $region31: #{tpu_custom_call.1} parent=1 // pred_check_branch
      %29 = sbr.rel (0) target = $region33
    $region32: #{tpu_custom_call.1} parent=1 // pred_region
      _
    $region33: #{tpu_custom_call.1} parent=1 // pred_fallthru
      _
    %v30 = vld [vmem:[%s0] sm:$0xff]
    %v31 = vld [vmem:[%s0 + $0x8] sm:$0xff]
    %v32 = vld [vmem:[%s0 + $0x10] sm:$0xff]
    %v33 = vld [vmem:[%s0 + $0x18] sm:$0xff]
    %v34 = vld [vmem:[%s0 + $0x20] sm:$0xff]
    %v35 = vld [vmem:[%s0 + $0x28] sm:$0xff]
    %v36 = vld [vmem:[%s0 + $0x30] sm:$0xff]
    %v37 = vld [vmem:[%s0 + $0x38] sm:$0xff]
    %v38 = vld [vmem:[%s0 + $0x40] sm:$0xff]
    %v39 = vld [vmem:[%s0 + $0x48] sm:$0xff]
    %v40 = vld [vmem:[%s0 + $0x50] sm:$0xff]
    %v41 = vld [vmem:[%s0 + $0x58] sm:$0xff]
    %v42 = vld [vmem:[%s0 + $0x60] sm:$0xff]
    %v43 = vld [vmem:[%s0 + $0x68] sm:$0xff]
    %v44 = vld [vmem:[%s0 + $0x70] sm:$0xff]
    %v45 = vld [vmem:[%s0 + $0x78] sm:$0xff]
    %v46 = vld [vmem:[%s0 + $0x80] sm:$0xff]
    %v47 = vld [vmem:[%s0 + $0x88] sm:$0xff]
    %v48 = vld [vmem:[%s0 + $0x90] sm:$0xff]
    %v49 = vld [vmem:[%s0 + $0x98] sm:$0xff]
    %v50 = vld [vmem:[%s0 + $0xa0] sm:$0xff]
    %v51 = vld [vmem:[%s0 + $0xa8] sm:$0xff]
    %v52 = vld [vmem:[%s0 + $0xb0] sm:$0xff]
    %v53 = vld [vmem:[%s0 + $0xb8] sm:$0xff]
    %v54 = vld [vmem:[%s0 + $0xc0] sm:$0xff]
    %v55 = vld [vmem:[%s0 + $0xc8] sm:$0xff]
    %v56 = vld [vmem:[%s0 + $0xd0] sm:$0xff]
    %v57 = vld [vmem:[%s0 + $0xd8] sm:$0xff]
    %v58 = vld [vmem:[%s0 + $0xe0] sm:$0xff]
    %v59 = vld [vmem:[%s0 + $0xe8] sm:$0xff]
    %v60 = vld [vmem:[%s0 + $0xf0] sm:$0xff]
    %v61 = vld [vmem:[%s0 + $0xf8] sm:$0xff]
    %v62 = vld [vmem:[%s0 + $0x100] sm:$0xff]
    %v63 = vld [vmem:[%s0 + $0x108] sm:$0xff]
    %v64 = vld [vmem:[%s0 + $0x110] sm:$0xff]
    %v65 = vld [vmem:[%s0 + $0x118] sm:$0xff]
    %v66 = vld [vmem:[%s0 + $0x120] sm:$0xff]
    %v67 = vld [vmem:[%s0 + $0x128] sm:$0xff]
    %v68 = vld [vmem:[%s0 + $0x130] sm:$0xff]
    %v69 = vld [vmem:[%s0 + $0x138] sm:$0xff]
    %v70 = vld [vmem:[%s0 + $0x140] sm:$0xff]
    %v71 = vld [vmem:[%s0 + $0x148] sm:$0xff]
    %v72 = vld [vmem:[%s0 + $0x150] sm:$0xff]
    %v73 = vld [vmem:[%s0 + $0x158] sm:$0xff]
    %v74 = vld [vmem:[%s0 + $0x160] sm:$0xff]
    %v75 = vld [vmem:[%s0 + $0x168] sm:$0xff]
    %v76 = vld [vmem:[%s0 + $0x170] sm:$0xff]
    %v77 = vld [vmem:[%s0 + $0x178] sm:$0xff]
    %v78 = vld [vmem:[%s0 + $0x180] sm:$0xff]
    %v79 = vld [vmem:[%s0 + $0x188] sm:$0xff]
    %v80 = vld [vmem:[%s0 + $0x190] sm:$0xff]
    %v81 = vld [vmem:[%s0 + $0x198] sm:$0xff]
    %v82 = vld [vmem:[%s0 + $0x1a0] sm:$0xff]
    %v83 = vld [vmem:[%s0 + $0x1a8] sm:$0xff]
    %v84 = vld [vmem:[%s0 + $0x1b0] sm:$0xff]
    %v85 = vld [vmem:[%s0 + $0x1b8] sm:$0xff]
    %v86 = vld [vmem:[%s0 + $0x1c0] sm:$0xff]
    %v87 = vld [vmem:[%s0 + $0x1c8] sm:$0xff]
    %v88 = vld [vmem:[%s0 + $0x1d0] sm:$0xff]
    %v89 = vld [vmem:[%s0 + $0x1d8] sm:$0xff]
    %v90 = vld [vmem:[%s0 + $0x1e0] sm:$0xff]
    %v91 = vld [vmem:[%s0 + $0x1e8] sm:$0xff]
    %v92 = vld [vmem:[%s0 + $0x1f0] sm:$0xff]
    %v93 = vld [vmem:[%s0 + $0x1f8] sm:$0xff]
    %v94 = vld [vmem:[%s0 + $0x200] sm:$0xff]
    %v95 = vld [vmem:[%s0 + $0x208] sm:$0xff]
    %v96 = vld [vmem:[%s0 + $0x210] sm:$0xff]
    %v97 = vld [vmem:[%s0 + $0x218] sm:$0xff]
    %v98 = vld [vmem:[%s0 + $0x220] sm:$0xff]
    %v99 = vld [vmem:[%s0 + $0x228] sm:$0xff]
    %v100 = vld [vmem:[%s0 + $0x230] sm:$0xff]
    %v101 = vld [vmem:[%s0 + $0x238] sm:$0xff]
    %v102 = vld [vmem:[%s0 + $0x240] sm:$0xff]
    %v103 = vld [vmem:[%s0 + $0x248] sm:$0xff]
    %v104 = vld [vmem:[%s0 + $0x250] sm:$0xff]
    %v105 = vld [vmem:[%s0 + $0x258] sm:$0xff]
    %v106 = vld [vmem:[%s0 + $0x260] sm:$0xff]
    %v107 = vld [vmem:[%s0 + $0x268] sm:$0xff]
    %v108 = vld [vmem:[%s0 + $0x270] sm:$0xff]
    %v109 = vld [vmem:[%s0 + $0x278] sm:$0xff]
    %v110 = vld [vmem:[%s0 + $0x280] sm:$0xff]
    %v111 = vld [vmem:[%s0 + $0x288] sm:$0xff]
    %v112 = vld [vmem:[%s0 + $0x290] sm:$0xff]
    %v113 = vld [vmem:[%s0 + $0x298] sm:$0xff]
    %v114 = vld [vmem:[%s0 + $0x2a0] sm:$0xff]
    %v115 = vld [vmem:[%s0 + $0x2a8] sm:$0xff]
    %v116 = vld [vmem:[%s0 + $0x2b0] sm:$0xff]
    %v117 = vld [vmem:[%s0 + $0x2b8] sm:$0xff]
    %v118 = vld [vmem:[%s0 + $0x2c0] sm:$0xff]
    %v119 = vld [vmem:[%s0 + $0x2c8] sm:$0xff]
    %v120 = vld [vmem:[%s0 + $0x2d0] sm:$0xff]
    %v121 = vld [vmem:[%s0 + $0x2d8] sm:$0xff]
    %v122 = vld [vmem:[%s0 + $0x2e0] sm:$0xff]
    %v123 = vld [vmem:[%s0 + $0x2e8] sm:$0xff]
    %v124 = vld [vmem:[%s0 + $0x2f0] sm:$0xff]
    %v125 = vld [vmem:[%s0 + $0x2f8] sm:$0xff]
    %v126 = vld [vmem:[%s0 + $0x300] sm:$0xff]
    %v127 = vld [vmem:[%s0 + $0x308] sm:$0xff]
    %v128 = vld [vmem:[%s0 + $0x310] sm:$0xff]
    %v129 = vld [vmem:[%s0 + $0x318] sm:$0xff]
    %v130 = vld [vmem:[%s0 + $0x320] sm:$0xff]
    %v131 = vld [vmem:[%s0 + $0x328] sm:$0xff]
    %v132 = vld [vmem:[%s0 + $0x330] sm:$0xff]
    %v133 = vld [vmem:[%s0 + $0x338] sm:$0xff]
    %v134 = vld [vmem:[%s0 + $0x340] sm:$0xff]
    %v135 = vld [vmem:[%s0 + $0x348] sm:$0xff]
    %v136 = vld [vmem:[%s0 + $0x350] sm:$0xff]
    %v137 = vld [vmem:[%s0 + $0x358] sm:$0xff]
    %v138 = vld [vmem:[%s0 + $0x360] sm:$0xff]
    %v139 = vld [vmem:[%s0 + $0x368] sm:$0xff]
    %v140 = vld [vmem:[%s0 + $0x370] sm:$0xff]
    %v141 = vld [vmem:[%s0 + $0x378] sm:$0xff]
    %v142 = vld [vmem:[%s0 + $0x380] sm:$0xff]
    %v143 = vld [vmem:[%s0 + $0x388] sm:$0xff]
    %v144 = vld [vmem:[%s0 + $0x390] sm:$0xff]
    %v145 = vld [vmem:[%s0 + $0x398] sm:$0xff]
    %v146 = vld [vmem:[%s0 + $0x3a0] sm:$0xff]
    %v147 = vld [vmem:[%s0 + $0x3a8] sm:$0xff]
    %v148 = vld [vmem:[%s0 + $0x3b0] sm:$0xff]
    %v149 = vld [vmem:[%s0 + $0x3b8] sm:$0xff]
    %v150 = vld [vmem:[%s0 + $0x3c0] sm:$0xff]
    %v151 = vld [vmem:[%s0 + $0x3c8] sm:$0xff]
    %v152 = vld [vmem:[%s0 + $0x3d0] sm:$0xff]
    %v153 = vld [vmem:[%s0 + $0x3d8] sm:$0xff]
    %v154 = vld [vmem:[%s0 + $0x3e0] sm:$0xff]
    %v155 = vld [vmem:[%s0 + $0x3e8] sm:$0xff]
    %v156 = vld [vmem:[%s0 + $0x3f0] sm:$0xff]
    %v157 = vld [vmem:[%s0 + $0x3f8] sm:$0xff]
    %v158 = vld [vmem:[%s1] sm:$0xff]
    %v159 = vld [vmem:[%s1 + $0x8] sm:$0x3]
    %v160 = vld [vmem:[%s2] sm:$0xff]
    %v161 = vld [vmem:[%s2 + $0x8] sm:$0x3]
    %163 = vset.pattern.permute.xlu0 0
    %164 = vperm.xlu0 %163, %v160
    %v165 = vpop.permute.xlu0 %164
    %168 = vset.pattern.permute.xlu0 0
    %169 = vperm.xlu0 %168, %v161
    %v170 = vpop.permute.xlu0 %169
    %vm172 = vcmask 80896
    %v174 = vsel %vm172, %v158, 0
    %v177 = vsel %vm172, %v159, 0
    %v180 = vsel %vm172, %v30, 0
    %v183 = vsel %vm172, %v31, 0
    %v186 = vsel %vm172, %v32, 0
    %v189 = vsel %vm172, %v33, 0
    %v192 = vsel %vm172, %v34, 0
    %v195 = vsel %vm172, %v35, 0
    %v198 = vsel %vm172, %v36, 0
    %v201 = vsel %vm172, %v37, 0
    %v204 = vsel %vm172, %v38, 0
    %v207 = vsel %vm172, %v39, 0
    %v210 = vsel %vm172, %v40, 0
    %v213 = vsel %vm172, %v41, 0
    %v216 = vsel %vm172, %v42, 0
    %v219 = vsel %vm172, %v43, 0
    %v222 = vsel %vm172, %v44, 0
    %v225 = vsel %vm172, %v45, 0
    %v228 = vsel %vm172, %v46, 0
    %v231 = vsel %vm172, %v47, 0
    %v234 = vsel %vm172, %v48, 0
    %v237 = vsel %vm172, %v49, 0
    %v240 = vsel %vm172, %v50, 0
    %v243 = vsel %vm172, %v51, 0
    %v246 = vsel %vm172, %v52, 0
    %v249 = vsel %vm172, %v53, 0
    %v252 = vsel %vm172, %v54, 0
    %v255 = vsel %vm172, %v55, 0
    %v258 = vsel %vm172, %v56, 0
    %v261 = vsel %vm172, %v57, 0
    %v264 = vsel %vm172, %v58, 0
    %v267 = vsel %vm172, %v59, 0
    %v270 = vsel %vm172, %v60, 0
    %v273 = vsel %vm172, %v61, 0
    %v276 = vsel %vm172, %v62, 0
    %v279 = vsel %vm172, %v63, 0
    %v282 = vsel %vm172, %v64, 0
    %v285 = vsel %vm172, %v65, 0
    %v288 = vsel %vm172, %v66, 0
    %v291 = vsel %vm172, %v67, 0
    %v294 = vsel %vm172, %v68, 0
    %v297 = vsel %vm172, %v69, 0
    %v300 = vsel %vm172, %v70, 0
    %v303 = vsel %vm172, %v71, 0
    %v306 = vsel %vm172, %v72, 0
    %v309 = vsel %vm172, %v73, 0
    %v312 = vsel %vm172, %v74, 0
    %v315 = vsel %vm172, %v75, 0
    %v318 = vsel %vm172, %v76, 0
    %v321 = vsel %vm172, %v77, 0
    %v324 = vsel %vm172, %v78, 0
    %v327 = vsel %vm172, %v79, 0
    %v330 = vsel %vm172, %v80, 0
    %v333 = vsel %vm172, %v81, 0
    %v336 = vsel %vm172, %v82, 0
    %v339 = vsel %vm172, %v83, 0
    %v342 = vsel %vm172, %v84, 0
    %v345 = vsel %vm172, %v85, 0
    %v348 = vsel %vm172, %v86, 0
    %v351 = vsel %vm172, %v87, 0
    %v354 = vsel %vm172, %v88, 0
    %v357 = vsel %vm172, %v89, 0
    %v360 = vsel %vm172, %v90, 0
    %v363 = vsel %vm172, %v91, 0
    %v366 = vsel %vm172, %v92, 0
    %v369 = vsel %vm172, %v93, 0
    %v372 = vsel %vm172, %v94, 0
    %v375 = vsel %vm172, %v95, 0
    %v378 = vsel %vm172, %v96, 0
    %v381 = vsel %vm172, %v97, 0
    %v384 = vsel %vm172, %v98, 0
    %v387 = vsel %vm172, %v99, 0
    %v390 = vsel %vm172, %v100, 0
    %v393 = vsel %vm172, %v101, 0
    %v396 = vsel %vm172, %v102, 0
    %v399 = vsel %vm172, %v103, 0
    %v402 = vsel %vm172, %v104, 0
    %v405 = vsel %vm172, %v105, 0
    %v408 = vsel %vm172, %v106, 0
    %v411 = vsel %vm172, %v107, 0
    %v414 = vsel %vm172, %v108, 0
    %v417 = vsel %vm172, %v109, 0
    %v420 = vsel %vm172, %v110, 0
    %v423 = vsel %vm172, %v111, 0
    %v426 = vsel %vm172, %v112, 0
    %v429 = vsel %vm172, %v113, 0
    %v432 = vsel %vm172, %v114, 0
    %v435 = vsel %vm172, %v115, 0
    %v438 = vsel %vm172, %v116, 0
    %v441 = vsel %vm172, %v117, 0
    %v444 = vsel %vm172, %v118, 0
    %v447 = vsel %vm172, %v119, 0
    %v450 = vsel %vm172, %v120, 0
    %v453 = vsel %vm172, %v121, 0
    %v456 = vsel %vm172, %v122, 0
    %v459 = vsel %vm172, %v123, 0
    %v462 = vsel %vm172, %v124, 0
    %v465 = vsel %vm172, %v125, 0
    %v468 = vsel %vm172, %v126, 0
    %v471 = vsel %vm172, %v127, 0
    %v474 = vsel %vm172, %v128, 0
    %v477 = vsel %vm172, %v129, 0
    %v480 = vsel %vm172, %v130, 0
    %v483 = vsel %vm172, %v131, 0
    %v486 = vsel %vm172, %v132, 0
    %v489 = vsel %vm172, %v133, 0
    %v492 = vsel %vm172, %v134, 0
    %v495 = vsel %vm172, %v135, 0
    %v498 = vsel %vm172, %v136, 0
    %v501 = vsel %vm172, %v137, 0
    %v504 = vsel %vm172, %v138, 0
    %v507 = vsel %vm172, %v139, 0
    %v510 = vsel %vm172, %v140, 0
    %v513 = vsel %vm172, %v141, 0
    %v516 = vsel %vm172, %v142, 0
    %v519 = vsel %vm172, %v143, 0
    %v522 = vsel %vm172, %v144, 0
    %v525 = vsel %vm172, %v145, 0
    %v528 = vsel %vm172, %v146, 0
    %v531 = vsel %vm172, %v147, 0
    %v534 = vsel %vm172, %v148, 0
    %v537 = vsel %vm172, %v149, 0
    %v540 = vsel %vm172, %v150, 0
    %v543 = vsel %vm172, %v151, 0
    %v546 = vsel %vm172, %v152, 0
    %v549 = vsel %vm172, %v153, 0
    %v552 = vsel %vm172, %v154, 0
    %v555 = vsel %vm172, %v155, 0
    %v558 = vsel %vm172, %v156, 0
    %v561 = vsel %vm172, %v157, 0
    %563 = vmatprep.subr.mxu0 0.0
    %564 = vmatpush1.xpose.msra.mxu0 %v180
    %565 = vmatprep.subr.mxu0 0.0
    %566 = vmatpush1.xpose.msra.mxu0 %v183
    %567 = vmatprep.subr.mxu0 0.0
    %568 = vmatpush1.xpose.msra.mxu0 %v186
    %569 = vmatprep.subr.mxu0 0.0
    %570 = vmatpush1.xpose.msra.mxu0 %v189
    %571 = vmatprep.subr.mxu0 0.0
    %572 = vmatpush1.xpose.msra.mxu0 %v192
    %573 = vmatprep.subr.mxu0 0.0
    %574 = vmatpush1.xpose.msra.mxu0 %v195
    %575 = vmatprep.subr.mxu0 0.0
    %576 = vmatpush1.xpose.msra.mxu0 %v198
    %577 = vmatprep.subr.mxu0 0.0
    %578 = vmatpush1.xpose.msra.mxu0 %v201
    %579 = vmatprep.subr.mxu0 0.0
    %580 = vmatpush1.xpose.msra.mxu0 %v204
    %581 = vmatprep.subr.mxu0 0.0
    %582 = vmatpush1.xpose.msra.mxu0 %v207
    %583 = vmatprep.subr.mxu0 0.0
    %584 = vmatpush1.xpose.msra.mxu0 %v210
    %585 = vmatprep.subr.mxu0 0.0
    %586 = vmatpush1.xpose.msra.mxu0 %v213
    %587 = vmatprep.subr.mxu0 0.0
    %588 = vmatpush1.xpose.msra.mxu0 %v216
    %589 = vmatprep.subr.mxu0 0.0
    %590 = vmatpush1.xpose.msra.mxu0 %v219
    %591 = vmatprep.subr.mxu0 0.0
    %592 = vmatpush1.xpose.msra.mxu0 %v222
    %593 = vmatprep.subr.mxu0 0.0
    %594 = vmatpush1.xpose.msra.mxu0 %v225
    %595 = vmatprep.subr.mxu0 0.0
    %596 = vmatpush1.xpose.msra.mxu0 %v228
    %597 = vmatprep.subr.mxu0 0.0
    %598 = vmatpush1.xpose.msra.mxu0 %v231
    %599 = vmatprep.subr.mxu0 0.0
    %600 = vmatpush1.xpose.msra.mxu0 %v234
    %601 = vmatprep.subr.mxu0 0.0
    %602 = vmatpush1.xpose.msra.mxu0 %v237
    %603 = vmatprep.subr.mxu0 0.0
    %604 = vmatpush1.xpose.msra.mxu0 %v240
    %605 = vmatprep.subr.mxu0 0.0
    %606 = vmatpush1.xpose.msra.mxu0 %v243
    %607 = vmatprep.subr.mxu0 0.0
    %608 = vmatpush1.xpose.msra.mxu0 %v246
    %609 = vmatprep.subr.mxu0 0.0
    %610 = vmatpush1.xpose.msra.mxu0 %v249
    %611 = vmatprep.subr.mxu0 0.0
    %612 = vmatpush1.xpose.msra.mxu0 %v252
    %613 = vmatprep.subr.mxu0 0.0
    %614 = vmatpush1.xpose.msra.mxu0 %v255
    %615 = vmatprep.subr.mxu0 0.0
    %616 = vmatpush1.xpose.msra.mxu0 %v258
    %617 = vmatprep.subr.mxu0 0.0
    %618 = vmatpush1.xpose.msra.mxu0 %v261
    %619 = vmatprep.subr.mxu0 0.0
    %620 = vmatpush1.xpose.msra.mxu0 %v264
    %621 = vmatprep.subr.mxu0 0.0
    %622 = vmatpush1.xpose.msra.mxu0 %v267
    %623 = vmatprep.subr.mxu0 0.0
    %624 = vmatpush1.xpose.msra.mxu0 %v270
    %625 = vmatprep.subr.mxu0 0.0
    %626 = vmatpush1.xpose.msra.mxu0 %v273
    %627 = vmatprep.mubr.f32.mxu0 0.0
    %628 = vmatmul.mubr.f32.gmra.mrb[0].mxu0 %v174
    %v629 = vpop.f32.mrb[0].mxu0
    %v630 = vadd.f32 %v165, %v629
    %v631 = vpop.f32.mrb[0].mxu0
    %v632 = vadd.f32 %v165, %v631
    %633 = vmatprep.mubr.f32.mxu0 0.0
    %634 = vmatmul.mubr.f32.gmra.mrb[0].mxu0 %v177
    %v635 = vpop.f32.mrb[0].mxu0
    %v636 = vadd.f32 %v170, %v635
    %v637 = vpop.f32.mrb[0].mxu0
    %v638 = vadd.f32 %v170, %v637
    %639 = vdwg.mxu0
    %640 = vmatprep.subr.mxu0 0.0
    %641 = vmatpush1.xpose.msra.mxu0 %v276
    %642 = vmatprep.subr.mxu0 0.0
    %643 = vmatpush1.xpose.msra.mxu0 %v279
    %644 = vmatprep.subr.mxu0 0.0
    %645 = vmatpush1.xpose.msra.mxu0 %v282
    %646 = vmatprep.subr.mxu0 0.0
    %647 = vmatpush1.xpose.msra.mxu0 %v285
    %648 = vmatprep.subr.mxu0 0.0
    %649 = vmatpush1.xpose.msra.mxu0 %v288
    %650 = vmatprep.subr.mxu0 0.0
    %651 = vmatpush1.xpose.msra.mxu0 %v291
    %652 = vmatprep.subr.mxu0 0.0
    %653 = vmatpush1.xpose.msra.mxu0 %v294
    %654 = vmatprep.subr.mxu0 0.0
    %655 = vmatpush1.xpose.msra.mxu0 %v297
    %656 = vmatprep.subr.mxu0 0.0
    %657 = vmatpush1.xpose.msra.mxu0 %v300
    %658 = vmatprep.subr.mxu0 0.0
    %659 = vmatpush1.xpose.msra.mxu0 %v303
    %660 = vmatprep.subr.mxu0 0.0
    %661 = vmatpush1.xpose.msra.mxu0 %v306
    %662 = vmatprep.subr.mxu0 0.0
    %663 = vmatpush1.xpose.msra.mxu0 %v309
    %664 = vmatprep.subr.mxu0 0.0
    %665 = vmatpush1.xpose.msra.mxu0 %v312
    %666 = vmatprep.subr.mxu0 0.0
    %667 = vmatpush1.xpose.msra.mxu0 %v315
    %668 = vmatprep.subr.mxu0 0.0
    %669 = vmatpush1.xpose.msra.mxu0 %v318
    %670 = vmatprep.subr.mxu0 0.0
    %671 = vmatpush1.xpose.msra.mxu0 %v321
    %672 = vmatprep.subr.mxu0 0.0
    %673 = vmatpush1.xpose.msra.mxu0 %v324
    %674 = vmatprep.subr.mxu0 0.0
    %675 = vmatpush1.xpose.msra.mxu0 %v327
    %676 = vmatprep.subr.mxu0 0.0
    %677 = vmatpush1.xpose.msra.mxu0 %v330
    %678 = vmatprep.subr.mxu0 0.0
    %679 = vmatpush1.xpose.msra.mxu0 %v333
    %680 = vmatprep.subr.mxu0 0.0
    %681 = vmatpush1.xpose.msra.mxu0 %v336
    %682 = vmatprep.subr.mxu0 0.0
    %683 = vmatpush1.xpose.msra.mxu0 %v339
    %684 = vmatprep.subr.mxu0 0.0
    %685 = vmatpush1.xpose.msra.mxu0 %v342
    %686 = vmatprep.subr.mxu0 0.0
    %687 = vmatpush1.xpose.msra.mxu0 %v345
    %688 = vmatprep.subr.mxu0 0.0
    %689 = vmatpush1.xpose.msra.mxu0 %v348
    %690 = vmatprep.subr.mxu0 0.0
    %691 = vmatpush1.xpose.msra.mxu0 %v351
    %692 = vmatprep.subr.mxu0 0.0
    %693 = vmatpush1.xpose.msra.mxu0 %v354
    %694 = vmatprep.subr.mxu0 0.0
    %695 = vmatpush1.xpose.msra.mxu0 %v357
    %696 = vmatprep.subr.mxu0 0.0
    %697 = vmatpush1.xpose.msra.mxu0 %v360
    %698 = vmatprep.subr.mxu0 0.0
    %699 = vmatpush1.xpose.msra.mxu0 %v363
    %700 = vmatprep.subr.mxu0 0.0
    %701 = vmatpush1.xpose.msra.mxu0 %v366
    %702 = vmatprep.subr.mxu0 0.0
    %703 = vmatpush1.xpose.msra.mxu0 %v369
    %704 = vmatprep.mubr.f32.mxu0 0.0
    %705 = vmatmul.mubr.f32.gmra.mrb[0].mxu0 %v174
    %v706 = vpop.f32.mrb[0].mxu0
    %v707 = vadd.f32 %v165, %v706
    %v708 = vpop.f32.mrb[0].mxu0
    %v709 = vadd.f32 %v165, %v708
    %710 = vmatprep.mubr.f32.mxu0 0.0
    %711 = vmatmul.mubr.f32.gmra.mrb[0].mxu0 %v177
    %v712 = vpop.f32.mrb[0].mxu0
    %v713 = vadd.f32 %v170, %v712
    %v714 = vpop.f32.mrb[0].mxu0
    %v715 = vadd.f32 %v170, %v714
    %716 = vdwg.mxu0
    %717 = vmatprep.subr.mxu0 0.0
    %718 = vmatpush1.xpose.msra.mxu0 %v372
    %719 = vmatprep.subr.mxu0 0.0
    %720 = vmatpush1.xpose.msra.mxu0 %v375
    %721 = vmatprep.subr.mxu0 0.0
    %722 = vmatpush1.xpose.msra.mxu0 %v378
    %723 = vmatprep.subr.mxu0 0.0
    %724 = vmatpush1.xpose.msra.mxu0 %v381
    %725 = vmatprep.subr.mxu0 0.0
    %726 = vmatpush1.xpose.msra.mxu0 %v384
    %727 = vmatprep.subr.mxu0 0.0
    %728 = vmatpush1.xpose.msra.mxu0 %v387
    %729 = vmatprep.subr.mxu0 0.0
    %730 = vmatpush1.xpose.msra.mxu0 %v390
    %731 = vmatprep.subr.mxu0 0.0
    %732 = vmatpush1.xpose.msra.mxu0 %v393
    %733 = vmatprep.subr.mxu0 0.0
    %734 = vmatpush1.xpose.msra.mxu0 %v396
    %735 = vmatprep.subr.mxu0 0.0
    %736 = vmatpush1.xpose.msra.mxu0 %v399
    %737 = vmatprep.subr.mxu0 0.0
    %738 = vmatpush1.xpose.msra.mxu0 %v402
    %739 = vmatprep.subr.mxu0 0.0
    %740 = vmatpush1.xpose.msra.mxu0 %v405
    %741 = vmatprep.subr.mxu0 0.0
    %742 = vmatpush1.xpose.msra.mxu0 %v408
    %743 = vmatprep.subr.mxu0 0.0
    %744 = vmatpush1.xpose.msra.mxu0 %v411
    %745 = vmatprep.subr.mxu0 0.0
    %746 = vmatpush1.xpose.msra.mxu0 %v414
    %747 = vmatprep.subr.mxu0 0.0
    %748 = vmatpush1.xpose.msra.mxu0 %v417
    %749 = vmatprep.subr.mxu0 0.0
    %750 = vmatpush1.xpose.msra.mxu0 %v420
    %751 = vmatprep.subr.mxu0 0.0
    %752 = vmatpush1.xpose.msra.mxu0 %v423
    %753 = vmatprep.subr.mxu0 0.0
    %754 = vmatpush1.xpose.msra.mxu0 %v426
    %755 = vmatprep.subr.mxu0 0.0
    %756 = vmatpush1.xpose.msra.mxu0 %v429
    %757 = vmatprep.subr.mxu0 0.0
    %758 = vmatpush1.xpose.msra.mxu0 %v432
    %759 = vmatprep.subr.mxu0 0.0
    %760 = vmatpush1.xpose.msra.mxu0 %v435
    %761 = vmatprep.subr.mxu0 0.0
    %762 = vmatpush1.xpose.msra.mxu0 %v438
    %763 = vmatprep.subr.mxu0 0.0
    %764 = vmatpush1.xpose.msra.mxu0 %v441
    %765 = vmatprep.subr.mxu0 0.0
    %766 = vmatpush1.xpose.msra.mxu0 %v444
    %767 = vmatprep.subr.mxu0 0.0
    %768 = vmatpush1.xpose.msra.mxu0 %v447
    %769 = vmatprep.subr.mxu0 0.0
    %770 = vmatpush1.xpose.msra.mxu0 %v450
    %771 = vmatprep.subr.mxu0 0.0
    %772 = vmatpush1.xpose.msra.mxu0 %v453
    %773 = vmatprep.subr.mxu0 0.0
    %774 = vmatpush1.xpose.msra.mxu0 %v456
    %775 = vmatprep.subr.mxu0 0.0
    %776 = vmatpush1.xpose.msra.mxu0 %v459
    %777 = vmatprep.subr.mxu0 0.0
    %778 = vmatpush1.xpose.msra.mxu0 %v462
    %779 = vmatprep.subr.mxu0 0.0
    %780 = vmatpush1.xpose.msra.mxu0 %v465
    %781 = vmatprep.mubr.f32.mxu0 0.0
    %782 = vmatmul.mubr.f32.gmra.mrb[0].mxu0 %v174
    %v783 = vpop.f32.mrb[0].mxu0
    %v784 = vadd.f32 %v165, %v783
    %v785 = vpop.f32.mrb[0].mxu0
    %v786 = vadd.f32 %v165, %v785
    %787 = vmatprep.mubr.f32.mxu0 0.0
    %788 = vmatmul.mubr.f32.gmra.mrb[0].mxu0 %v177
    %v789 = vpop.f32.mrb[0].mxu0
    %v790 = vadd.f32 %v170, %v789
    %v791 = vpop.f32.mrb[0].mxu0
    %v792 = vadd.f32 %v170, %v791
    %793 = vdwg.mxu0
    %794 = vmatprep.subr.mxu0 0.0
    %795 = vmatpush1.xpose.msra.mxu0 %v468
    %796 = vmatprep.subr.mxu0 0.0
    %797 = vmatpush1.xpose.msra.mxu0 %v471
    %798 = vmatprep.subr.mxu0 0.0
    %799 = vmatpush1.xpose.msra.mxu0 %v474
    %800 = vmatprep.subr.mxu0 0.0
    %801 = vmatpush1.xpose.msra.mxu0 %v477
    %802 = vmatprep.subr.mxu0 0.0
    %803 = vmatpush1.xpose.msra.mxu0 %v480
    %804 = vmatprep.subr.mxu0 0.0
    %805 = vmatpush1.xpose.msra.mxu0 %v483
    %806 = vmatprep.subr.mxu0 0.0
    %807 = vmatpush1.xpose.msra.mxu0 %v486
    %808 = vmatprep.subr.mxu0 0.0
    %809 = vmatpush1.xpose.msra.mxu0 %v489
    %810 = vmatprep.subr.mxu0 0.0
    %811 = vmatpush1.xpose.msra.mxu0 %v492
    %812 = vmatprep.subr.mxu0 0.0
    %813 = vmatpush1.xpose.msra.mxu0 %v495
    %814 = vmatprep.subr.mxu0 0.0
    %815 = vmatpush1.xpose.msra.mxu0 %v498
    %816 = vmatprep.subr.mxu0 0.0
    %817 = vmatpush1.xpose.msra.mxu0 %v501
    %818 = vmatprep.subr.mxu0 0.0
    %819 = vmatpush1.xpose.msra.mxu0 %v504
    %820 = vmatprep.subr.mxu0 0.0
    %821 = vmatpush1.xpose.msra.mxu0 %v507
    %822 = vmatprep.subr.mxu0 0.0
    %823 = vmatpush1.xpose.msra.mxu0 %v510
    %824 = vmatprep.subr.mxu0 0.0
    %825 = vmatpush1.xpose.msra.mxu0 %v513
    %826 = vmatprep.subr.mxu0 0.0
    %827 = vmatpush1.xpose.msra.mxu0 %v516
    %828 = vmatprep.subr.mxu0 0.0
    %829 = vmatpush1.xpose.msra.mxu0 %v519
    %830 = vmatprep.subr.mxu0 0.0
    %831 = vmatpush1.xpose.msra.mxu0 %v522
    %832 = vmatprep.subr.mxu0 0.0
    %833 = vmatpush1.xpose.msra.mxu0 %v525
    %834 = vmatprep.subr.mxu0 0.0
    %835 = vmatpush1.xpose.msra.mxu0 %v528
    %836 = vmatprep.subr.mxu0 0.0
    %837 = vmatpush1.xpose.msra.mxu0 %v531
    %838 = vmatprep.subr.mxu0 0.0
    %839 = vmatpush1.xpose.msra.mxu0 %v534
    %840 = vmatprep.subr.mxu0 0.0
    %841 = vmatpush1.xpose.msra.mxu0 %v537
    %842 = vmatprep.subr.mxu0 0.0
    %843 = vmatpush1.xpose.msra.mxu0 %v540
    %844 = vmatprep.subr.mxu0 0.0
    %845 = vmatpush1.xpose.msra.mxu0 %v543
    %846 = vmatprep.subr.mxu0 0.0
    %847 = vmatpush1.xpose.msra.mxu0 %v546
    %848 = vmatprep.subr.mxu0 0.0
    %849 = vmatpush1.xpose.msra.mxu0 %v549
    %850 = vmatprep.subr.mxu0 0.0
    %851 = vmatpush1.xpose.msra.mxu0 %v552
    %852 = vmatprep.subr.mxu0 0.0
    %853 = vmatpush1.xpose.msra.mxu0 %v555
    %854 = vmatprep.subr.mxu0 0.0
    %855 = vmatpush1.xpose.msra.mxu0 %v558
    %856 = vmatprep.subr.mxu0 0.0
    %857 = vmatpush1.xpose.msra.mxu0 %v561
    %858 = vmatprep.mubr.f32.mxu0 0.0
    %859 = vmatmul.mubr.f32.gmra.mrb[0].mxu0 %v174
    %v860 = vpop.f32.mrb[0].mxu0
    %v861 = vadd.f32 %v165, %v860
    %v862 = vpop.f32.mrb[0].mxu0
    %v863 = vadd.f32 %v165, %v862
    %864 = vmatprep.mubr.f32.mxu0 0.0
    %865 = vmatmul.mubr.f32.gmra.mrb[0].mxu0 %v177
    %v866 = vpop.f32.mrb[0].mxu0
    %v867 = vadd.f32 %v170, %v866
    %v868 = vpop.f32.mrb[0].mxu0
    %v869 = vadd.f32 %v170, %v868
    %870 = vdwg.mxu0
    %v871 = vmax.f32 %v630, 0.0
    %v872 = vmax.f32 %v632, 0.0
    %v873 = vmax.f32 %v707, 0.0
    %v874 = vmax.f32 %v709, 0.0
    %v875 = vmax.f32 %v784, 0.0
    %v876 = vmax.f32 %v786, 0.0
    %v877 = vmax.f32 %v861, 0.0
    %v878 = vmax.f32 %v863, 0.0
    %v879 = vmax.f32 %v636, 0.0
    %v880 = vmax.f32 %v638, 0.0
    %v881 = vmax.f32 %v713, 0.0
    %v882 = vmax.f32 %v715, 0.0
    %v883 = vmax.f32 %v790, 0.0
    %v884 = vmax.f32 %v792, 0.0
    %v885 = vmax.f32 %v867, 0.0
    %v886 = vmax.f32 %v869, 0.0
    %v887 = vld [vmem:[%s3] sm:$0x1f]
    %v888 = vld [vmem:[%s4] sm:$0x1f]
    %890 = vset.pattern.permute.xlu0 0
    %891 = vperm.xlu0 %890, %v888
    %v892 = vpop.permute.xlu0 %891
    %v895 = vsel %vm172, %v887, 0
    %vm897 = vcmask 1041408
    %v899 = vsel %vm897, %v879, 0
    %v902 = vsel %vm897, %v880, 0
    %v905 = vsel %vm897, %v881, 0
    %v908 = vsel %vm897, %v882, 0
    %v911 = vsel %vm897, %v883, 0
    %v914 = vsel %vm897, %v884, 0
    %v917 = vsel %vm897, %v885, 0
    %v920 = vsel %vm897, %v886, 0
    %922 = vmatprep.subr.mxu0 %v872
    %923 = vmatpush1.msra.mxu0 %v871
    %924 = vmatprep.subr.mxu0 %v902
    %925 = vmatpush1.msra.mxu0 %v899
    %926 = vmatprep.subr.mxu0 0.0
    %927 = vmatpush1.msra.mxu0 0.0
    %928 = vmatprep.subr.mxu0 0.0
    %929 = vmatpush1.msra.mxu0 0.0
    %930 = vmatprep.subr.mxu0 0.0
    %931 = vmatpush1.msra.mxu0 0.0
    %932 = vmatprep.subr.mxu0 0.0
    %933 = vmatpush1.msra.mxu0 0.0
    %934 = vmatprep.subr.mxu0 0.0
    %935 = vmatpush1.msra.mxu0 0.0
    %936 = vmatprep.subr.mxu0 0.0
    %937 = vmatpush1.msra.mxu0 0.0
    %938 = vmatprep.subr.mxu0 0.0
    %939 = vmatpush1.msra.mxu0 0.0
    %940 = vmatprep.subr.mxu0 0.0
    %941 = vmatpush1.msra.mxu0 0.0
    %942 = vmatprep.subr.mxu0 0.0
    %943 = vmatpush1.msra.mxu0 0.0
    %944 = vmatprep.subr.mxu0 0.0
    %945 = vmatpush1.msra.mxu0 0.0
    %946 = vmatprep.subr.mxu0 0.0
    %947 = vmatpush1.msra.mxu0 0.0
    %948 = vmatprep.subr.mxu0 0.0
    %949 = vmatpush1.msra.mxu0 0.0
    %950 = vmatprep.subr.mxu0 0.0
    %951 = vmatpush1.msra.mxu0 0.0
    %952 = vmatprep.subr.mxu0 0.0
    %953 = vmatpush1.msra.mxu0 0.0
    %954 = vmatprep.subr.mxu0 0.0
    %955 = vmatpush1.msra.mxu0 0.0
    %956 = vmatprep.subr.mxu0 0.0
    %957 = vmatpush1.msra.mxu0 0.0
    %958 = vmatprep.subr.mxu0 0.0
    %959 = vmatpush1.msra.mxu0 0.0
    %960 = vmatprep.subr.mxu0 0.0
    %961 = vmatpush1.msra.mxu0 0.0
    %962 = vmatprep.subr.mxu0 0.0
    %963 = vmatpush1.msra.mxu0 0.0
    %964 = vmatprep.subr.mxu0 0.0
    %965 = vmatpush1.msra.mxu0 0.0
    %966 = vmatprep.subr.mxu0 0.0
    %967 = vmatpush1.msra.mxu0 0.0
    %968 = vmatprep.subr.mxu0 0.0
    %969 = vmatpush1.msra.mxu0 0.0
    %970 = vmatprep.subr.mxu0 0.0
    %971 = vmatpush1.msra.mxu0 0.0
    %972 = vmatprep.subr.mxu0 0.0
    %973 = vmatpush1.msra.mxu0 0.0
    %974 = vmatprep.subr.mxu0 0.0
    %975 = vmatpush1.msra.mxu0 0.0
    %976 = vmatprep.subr.mxu0 0.0
    %977 = vmatpush1.msra.mxu0 0.0
    %978 = vmatprep.subr.mxu0 0.0
    %979 = vmatpush1.msra.mxu0 0.0
    %980 = vmatprep.subr.mxu0 0.0
    %981 = vmatpush1.msra.mxu0 0.0
    %982 = vmatprep.subr.mxu0 0.0
    %983 = vmatpush1.msra.mxu0 0.0
    %984 = vmatprep.subr.mxu0 0.0
    %985 = vmatpush1.msra.mxu0 0.0
    %986 = vmatprep.mubr.f32.mxu0 0.0
    %987 = vmatmul.mubr.f32.gmra.mrb[0].mxu0 %v895
    %v988 = vpop.f32.mrb[0].mxu0
    %v989 = vadd.f32 %v892, %v988
    %v990 = vpop.f32.mrb[0].mxu0
    %v991 = vadd.f32 %v892, %v990
    %992 = vdwg.mxu0
    %993 = vmatprep.subr.mxu0 %v874
    %994 = vmatpush1.msra.mxu0 %v873
    %995 = vmatprep.subr.mxu0 %v908
    %996 = vmatpush1.msra.mxu0 %v905
    %997 = vmatprep.subr.mxu0 0.0
    %998 = vmatpush1.msra.mxu0 0.0
    %999 = vmatprep.subr.mxu0 0.0
    %1000 = vmatpush1.msra.mxu0 0.0
    %1001 = vmatprep.subr.mxu0 0.0
    %1002 = vmatpush1.msra.mxu0 0.0
    %1003 = vmatprep.subr.mxu0 0.0
    %1004 = vmatpush1.msra.mxu0 0.0
    %1005 = vmatprep.subr.mxu0 0.0
    %1006 = vmatpush1.msra.mxu0 0.0
    %1007 = vmatprep.subr.mxu0 0.0
    %1008 = vmatpush1.msra.mxu0 0.0
    %1009 = vmatprep.subr.mxu0 0.0
    %1010 = vmatpush1.msra.mxu0 0.0
    %1011 = vmatprep.subr.mxu0 0.0
    %1012 = vmatpush1.msra.mxu0 0.0
    %1013 = vmatprep.subr.mxu0 0.0
    %1014 = vmatpush1.msra.mxu0 0.0
    %1015 = vmatprep.subr.mxu0 0.0
    %1016 = vmatpush1.msra.mxu0 0.0
    %1017 = vmatprep.subr.mxu0 0.0
    %1018 = vmatpush1.msra.mxu0 0.0
    %1019 = vmatprep.subr.mxu0 0.0
    %1020 = vmatpush1.msra.mxu0 0.0
    %1021 = vmatprep.subr.mxu0 0.0
    %1022 = vmatpush1.msra.mxu0 0.0
    %1023 = vmatprep.subr.mxu0 0.0
    %1024 = vmatpush1.msra.mxu0 0.0
    %1025 = vmatprep.subr.mxu0 0.0
    %1026 = vmatpush1.msra.mxu0 0.0
    %1027 = vmatprep.subr.mxu0 0.0
    %1028 = vmatpush1.msra.mxu0 0.0
    %1029 = vmatprep.subr.mxu0 0.0
    %1030 = vmatpush1.msra.mxu0 0.0
    %1031 = vmatprep.subr.mxu0 0.0
    %1032 = vmatpush1.msra.mxu0 0.0
    %1033 = vmatprep.subr.mxu0 0.0
    %1034 = vmatpush1.msra.mxu0 0.0
    %1035 = vmatprep.subr.mxu0 0.0
    %1036 = vmatpush1.msra.mxu0 0.0
    %1037 = vmatprep.subr.mxu0 0.0
    %1038 = vmatpush1.msra.mxu0 0.0
    %1039 = vmatprep.subr.mxu0 0.0
    %1040 = vmatpush1.msra.mxu0 0.0
    %1041 = vmatprep.subr.mxu0 0.0
    %1042 = vmatpush1.msra.mxu0 0.0
    %1043 = vmatprep.subr.mxu0 0.0
    %1044 = vmatpush1.msra.mxu0 0.0
    %1045 = vmatprep.subr.mxu0 0.0
    %1046 = vmatpush1.msra.mxu0 0.0
    %1047 = vmatprep.subr.mxu0 0.0
    %1048 = vmatpush1.msra.mxu0 0.0
    %1049 = vmatprep.subr.mxu0 0.0
    %1050 = vmatpush1.msra.mxu0 0.0
    %1051 = vmatprep.subr.mxu0 0.0
    %1052 = vmatpush1.msra.mxu0 0.0
    %1053 = vmatprep.subr.mxu0 0.0
    %1054 = vmatpush1.msra.mxu0 0.0
    %1055 = vmatprep.subr.mxu0 0.0
    %1056 = vmatpush1.msra.mxu0 0.0
    %1057 = vmatprep.mubr.f32.mxu0 0.0
    %1058 = vmatmul.mubr.f32.gmra.mrb[0].mxu0 %v895
    %v1059 = vpop.f32.mrb[0].mxu0
    %v1060 = vadd.f32 %v892, %v1059
    %v1061 = vpop.f32.mrb[0].mxu0
    %v1062 = vadd.f32 %v892, %v1061
    %1063 = vdwg.mxu0
    %1064 = vmatprep.subr.mxu0 %v876
    %1065 = vmatpush1.msra.mxu0 %v875
    %1066 = vmatprep.subr.mxu0 %v914
    %1067 = vmatpush1.msra.mxu0 %v911
    %1068 = vmatprep.subr.mxu0 0.0
    %1069 = vmatpush1.msra.mxu0 0.0
    %1070 = vmatprep.subr.mxu0 0.0
    %1071 = vmatpush1.msra.mxu0 0.0
    %1072 = vmatprep.subr.mxu0 0.0
    %1073 = vmatpush1.msra.mxu0 0.0
    %1074 = vmatprep.subr.mxu0 0.0
    %1075 = vmatpush1.msra.mxu0 0.0
    %1076 = vmatprep.subr.mxu0 0.0
    %1077 = vmatpush1.msra.mxu0 0.0
    %1078 = vmatprep.subr.mxu0 0.0
    %1079 = vmatpush1.msra.mxu0 0.0
    %1080 = vmatprep.subr.mxu0 0.0
    %1081 = vmatpush1.msra.mxu0 0.0
    %1082 = vmatprep.subr.mxu0 0.0
    %1083 = vmatpush1.msra.mxu0 0.0
    %1084 = vmatprep.subr.mxu0 0.0
    %1085 = vmatpush1.msra.mxu0 0.0
    %1086 = vmatprep.subr.mxu0 0.0
    %1087 = vmatpush1.msra.mxu0 0.0
    %1088 = vmatprep.subr.mxu0 0.0
    %1089 = vmatpush1.msra.mxu0 0.0
    %1090 = vmatprep.subr.mxu0 0.0
    %1091 = vmatpush1.msra.mxu0 0.0
    %1092 = vmatprep.subr.mxu0 0.0
    %1093 = vmatpush1.msra.mxu0 0.0
    %1094 = vmatprep.subr.mxu0 0.0
    %1095 = vmatpush1.msra.mxu0 0.0
    %1096 = vmatprep.subr.mxu0 0.0
    %1097 = vmatpush1.msra.mxu0 0.0
    %1098 = vmatprep.subr.mxu0 0.0
    %1099 = vmatpush1.msra.mxu0 0.0
    %1100 = vmatprep.subr.mxu0 0.0
    %1101 = vmatpush1.msra.mxu0 0.0
    %1102 = vmatprep.subr.mxu0 0.0
    %1103 = vmatpush1.msra.mxu0 0.0
    %1104 = vmatprep.subr.mxu0 0.0
    %1105 = vmatpush1.msra.mxu0 0.0
    %1106 = vmatprep.subr.mxu0 0.0
    %1107 = vmatpush1.msra.mxu0 0.0
    %1108 = vmatprep.subr.mxu0 0.0
    %1109 = vmatpush1.msra.mxu0 0.0
    %1110 = vmatprep.subr.mxu0 0.0
    %1111 = vmatpush1.msra.mxu0 0.0
    %1112 = vmatprep.subr.mxu0 0.0
    %1113 = vmatpush1.msra.mxu0 0.0
    %1114 = vmatprep.subr.mxu0 0.0
    %1115 = vmatpush1.msra.mxu0 0.0
    %1116 = vmatprep.subr.mxu0 0.0
    %1117 = vmatpush1.msra.mxu0 0.0
    %1118 = vmatprep.subr.mxu0 0.0
    %1119 = vmatpush1.msra.mxu0 0.0
    %1120 = vmatprep.subr.mxu0 0.0
    %1121 = vmatpush1.msra.mxu0 0.0
    %1122 = vmatprep.subr.mxu0 0.0
    %1123 = vmatpush1.msra.mxu0 0.0
    %1124 = vmatprep.subr.mxu0 0.0
    %1125 = vmatpush1.msra.mxu0 0.0
    %1126 = vmatprep.subr.mxu0 0.0
    %1127 = vmatpush1.msra.mxu0 0.0
    %1128 = vmatprep.mubr.f32.mxu0 0.0
    %1129 = vmatmul.mubr.f32.gmra.mrb[0].mxu0 %v895
    %v1130 = vpop.f32.mrb[0].mxu0
    %v1131 = vadd.f32 %v892, %v1130
    %v1132 = vpop.f32.mrb[0].mxu0
    %v1133 = vadd.f32 %v892, %v1132
    %1134 = vdwg.mxu0
    %1135 = vmatprep.subr.mxu0 %v878
    %1136 = vmatpush1.msra.mxu0 %v877
    %1137 = vmatprep.subr.mxu0 %v920
    %1138 = vmatpush1.msra.mxu0 %v917
    %1139 = vmatprep.subr.mxu0 0.0
    %1140 = vmatpush1.msra.mxu0 0.0
    %1141 = vmatprep.subr.mxu0 0.0
    %1142 = vmatpush1.msra.mxu0 0.0
    %1143 = vmatprep.subr.mxu0 0.0
    %1144 = vmatpush1.msra.mxu0 0.0
    %1145 = vmatprep.subr.mxu0 0.0
    %1146 = vmatpush1.msra.mxu0 0.0
    %1147 = vmatprep.subr.mxu0 0.0
    %1148 = vmatpush1.msra.mxu0 0.0
    %1149 = vmatprep.subr.mxu0 0.0
    %1150 = vmatpush1.msra.mxu0 0.0
    %1151 = vmatprep.subr.mxu0 0.0
    %1152 = vmatpush1.msra.mxu0 0.0
    %1153 = vmatprep.subr.mxu0 0.0
    %1154 = vmatpush1.msra.mxu0 0.0
    %1155 = vmatprep.subr.mxu0 0.0
    %1156 = vmatpush1.msra.mxu0 0.0
    %1157 = vmatprep.subr.mxu0 0.0
    %1158 = vmatpush1.msra.mxu0 0.0
    %1159 = vmatprep.subr.mxu0 0.0
    %1160 = vmatpush1.msra.mxu0 0.0
    %1161 = vmatprep.subr.mxu0 0.0
    %1162 = vmatpush1.msra.mxu0 0.0
    %1163 = vmatprep.subr.mxu0 0.0
    %1164 = vmatpush1.msra.mxu0 0.0
    %1165 = vmatprep.subr.mxu0 0.0
    %1166 = vmatpush1.msra.mxu0 0.0
    %1167 = vmatprep.subr.mxu0 0.0
    %1168 = vmatpush1.msra.mxu0 0.0
    %1169 = vmatprep.subr.mxu0 0.0
    %1170 = vmatpush1.msra.mxu0 0.0
    %1171 = vmatprep.subr.mxu0 0.0
    %1172 = vmatpush1.msra.mxu0 0.0
    %1173 = vmatprep.subr.mxu0 0.0
    %1174 = vmatpush1.msra.mxu0 0.0
    %1175 = vmatprep.subr.mxu0 0.0
    %1176 = vmatpush1.msra.mxu0 0.0
    %1177 = vmatprep.subr.mxu0 0.0
    %1178 = vmatpush1.msra.mxu0 0.0
    %1179 = vmatprep.subr.mxu0 0.0
    %1180 = vmatpush1.msra.mxu0 0.0
    %1181 = vmatprep.subr.mxu0 0.0
    %1182 = vmatpush1.msra.mxu0 0.0
    %1183 = vmatprep.subr.mxu0 0.0
    %1184 = vmatpush1.msra.mxu0 0.0
    %1185 = vmatprep.subr.mxu0 0.0
    %1186 = vmatpush1.msra.mxu0 0.0
    %1187 = vmatprep.subr.mxu0 0.0
    %1188 = vmatpush1.msra.mxu0 0.0
    %1189 = vmatprep.subr.mxu0 0.0
    %1190 = vmatpush1.msra.mxu0 0.0
    %1191 = vmatprep.subr.mxu0 0.0
    %1192 = vmatpush1.msra.mxu0 0.0
    %1193 = vmatprep.subr.mxu0 0.0
    %1194 = vmatpush1.msra.mxu0 0.0
    %1195 = vmatprep.subr.mxu0 0.0
    %1196 = vmatpush1.msra.mxu0 0.0
    %1197 = vmatprep.subr.mxu0 0.0
    %1198 = vmatpush1.msra.mxu0 0.0
    %1199 = vmatprep.mubr.f32.mxu0 0.0
    %1200 = vmatmul.mubr.f32.gmra.mrb[0].mxu0 %v895
    %v1201 = vpop.f32.mrb[0].mxu0
    %v1202 = vadd.f32 %v892, %v1201
    %v1203 = vpop.f32.mrb[0].mxu0
    %v1204 = vadd.f32 %v892, %v1203
    %1205 = vdwg.mxu0
    %v1206 = vmax.f32 %v989, 0.0
    %v1207 = vmax.f32 %v991, 0.0
    %v1208 = vmax.f32 %v1060, 0.0
    %v1209 = vmax.f32 %v1062, 0.0
    %v1210 = vmax.f32 %v1131, 0.0
    %v1211 = vmax.f32 %v1133, 0.0
    %v1212 = vmax.f32 %v1202, 0.0
    %v1213 = vmax.f32 %v1204, 0.0
    %v1214 = vld [vmem:[%s5] sm:$0x1f]
    %v1215 = vld [vmem:[%s6] sm:$0x1f]
    %1217 = vset.pattern.permute.xlu0 0
    %1218 = vperm.xlu0 %1217, %v1215
    %v1219 = vpop.permute.xlu0 %1218
    %vm1221 = vcmask 39936
    %v1223 = vsel %vm1221, %v1214, 0
    %vm1225 = vcmask 1044480
    %v1227 = vsel %vm1225, %v1206, 0
    %v1230 = vsel %vm1225, %v1207, 0
    %v1233 = vsel %vm1225, %v1208, 0
    %v1236 = vsel %vm1225, %v1209, 0
    %v1239 = vsel %vm1225, %v1210, 0
    %v1242 = vsel %vm1225, %v1211, 0
    %v1245 = vsel %vm1225, %v1212, 0
    %v1248 = vsel %vm1225, %v1213, 0
    %1250 = vmatprep.subr.mxu0 %v1230
    %1251 = vmatpush1.msra.mxu0 %v1227
    %1252 = vmatprep.subr.mxu0 0.0
    %1253 = vmatpush1.msra.mxu0 0.0
    %1254 = vmatprep.subr.mxu0 0.0
    %1255 = vmatpush1.msra.mxu0 0.0
    %1256 = vmatprep.subr.mxu0 0.0
    %1257 = vmatpush1.msra.mxu0 0.0
    %1258 = vmatprep.subr.mxu0 0.0
    %1259 = vmatpush1.msra.mxu0 0.0
    %1260 = vmatprep.subr.mxu0 0.0
    %1261 = vmatpush1.msra.mxu0 0.0
    %1262 = vmatprep.subr.mxu0 0.0
    %1263 = vmatpush1.msra.mxu0 0.0
    %1264 = vmatprep.subr.mxu0 0.0
    %1265 = vmatpush1.msra.mxu0 0.0
    %1266 = vmatprep.subr.mxu0 0.0
    %1267 = vmatpush1.msra.mxu0 0.0
    %1268 = vmatprep.subr.mxu0 0.0
    %1269 = vmatpush1.msra.mxu0 0.0
    %1270 = vmatprep.subr.mxu0 0.0
    %1271 = vmatpush1.msra.mxu0 0.0
    %1272 = vmatprep.subr.mxu0 0.0
    %1273 = vmatpush1.msra.mxu0 0.0
    %1274 = vmatprep.subr.mxu0 0.0
    %1275 = vmatpush1.msra.mxu0 0.0
    %1276 = vmatprep.subr.mxu0 0.0
    %1277 = vmatpush1.msra.mxu0 0.0
    %1278 = vmatprep.subr.mxu0 0.0
    %1279 = vmatpush1.msra.mxu0 0.0
    %1280 = vmatprep.subr.mxu0 0.0
    %1281 = vmatpush1.msra.mxu0 0.0
    %1282 = vmatprep.subr.mxu0 0.0
    %1283 = vmatpush1.msra.mxu0 0.0
    %1284 = vmatprep.subr.mxu0 0.0
    %1285 = vmatpush1.msra.mxu0 0.0
    %1286 = vmatprep.subr.mxu0 0.0
    %1287 = vmatpush1.msra.mxu0 0.0
    %1288 = vmatprep.subr.mxu0 0.0
    %1289 = vmatpush1.msra.mxu0 0.0
    %1290 = vmatprep.subr.mxu0 0.0
    %1291 = vmatpush1.msra.mxu0 0.0
    %1292 = vmatprep.subr.mxu0 0.0
    %1293 = vmatpush1.msra.mxu0 0.0
    %1294 = vmatprep.subr.mxu0 0.0
    %1295 = vmatpush1.msra.mxu0 0.0
    %1296 = vmatprep.subr.mxu0 0.0
    %1297 = vmatpush1.msra.mxu0 0.0
    %1298 = vmatprep.subr.mxu0 0.0
    %1299 = vmatpush1.msra.mxu0 0.0
    %1300 = vmatprep.subr.mxu0 0.0
    %1301 = vmatpush1.msra.mxu0 0.0
    %1302 = vmatprep.subr.mxu0 0.0
    %1303 = vmatpush1.msra.mxu0 0.0
    %1304 = vmatprep.subr.mxu0 0.0
    %1305 = vmatpush1.msra.mxu0 0.0
    %1306 = vmatprep.subr.mxu0 0.0
    %1307 = vmatpush1.msra.mxu0 0.0
    %1308 = vmatprep.subr.mxu0 0.0
    %1309 = vmatpush1.msra.mxu0 0.0
    %1310 = vmatprep.subr.mxu0 0.0
    %1311 = vmatpush1.msra.mxu0 0.0
    %1312 = vmatprep.subr.mxu0 0.0
    %1313 = vmatpush1.msra.mxu0 0.0
    %1314 = vmatprep.mubr.f32.mxu0 0.0
    %1315 = vmatmul.mubr.f32.gmra.mrb[0].mxu0 %v1223
    %v1316 = vpop.f32.mrb[0].mxu0
    %v1317 = vadd.f32 %v1219, %v1316
    %v1318 = vpop.f32.mrb[0].mxu0
    %v1319 = vadd.f32 %v1219, %v1318
    %1320 = vdwg.mxu0
    %1321 = vmatprep.subr.mxu0 %v1236
    %1322 = vmatpush1.msra.mxu0 %v1233
    %1323 = vmatprep.subr.mxu0 0.0
    %1324 = vmatpush1.msra.mxu0 0.0
    %1325 = vmatprep.subr.mxu0 0.0
    %1326 = vmatpush1.msra.mxu0 0.0
    %1327 = vmatprep.subr.mxu0 0.0
    %1328 = vmatpush1.msra.mxu0 0.0
    %1329 = vmatprep.subr.mxu0 0.0
    %1330 = vmatpush1.msra.mxu0 0.0
    %1331 = vmatprep.subr.mxu0 0.0
    %1332 = vmatpush1.msra.mxu0 0.0
    %1333 = vmatprep.subr.mxu0 0.0
    %1334 = vmatpush1.msra.mxu0 0.0
    %1335 = vmatprep.subr.mxu0 0.0
    %1336 = vmatpush1.msra.mxu0 0.0
    %1337 = vmatprep.subr.mxu0 0.0
    %1338 = vmatpush1.msra.mxu0 0.0
    %1339 = vmatprep.subr.mxu0 0.0
    %1340 = vmatpush1.msra.mxu0 0.0
    %1341 = vmatprep.subr.mxu0 0.0
    %1342 = vmatpush1.msra.mxu0 0.0
    %1343 = vmatprep.subr.mxu0 0.0
    %1344 = vmatpush1.msra.mxu0 0.0
    %1345 = vmatprep.subr.mxu0 0.0
    %1346 = vmatpush1.msra.mxu0 0.0
    %1347 = vmatprep.subr.mxu0 0.0
    %1348 = vmatpush1.msra.mxu0 0.0
    %1349 = vmatprep.subr.mxu0 0.0
    %1350 = vmatpush1.msra.mxu0 0.0
    %1351 = vmatprep.subr.mxu0 0.0
    %1352 = vmatpush1.msra.mxu0 0.0
    %1353 = vmatprep.subr.mxu0 0.0
    %1354 = vmatpush1.msra.mxu0 0.0
    %1355 = vmatprep.subr.mxu0 0.0
    %1356 = vmatpush1.msra.mxu0 0.0
    %1357 = vmatprep.subr.mxu0 0.0
    %1358 = vmatpush1.msra.mxu0 0.0
    %1359 = vmatprep.subr.mxu0 0.0
    %1360 = vmatpush1.msra.mxu0 0.0
    %1361 = vmatprep.subr.mxu0 0.0
    %1362 = vmatpush1.msra.mxu0 0.0
    %1363 = vmatprep.subr.mxu0 0.0
    %1364 = vmatpush1.msra.mxu0 0.0
    %1365 = vmatprep.subr.mxu0 0.0
    %1366 = vmatpush1.msra.mxu0 0.0
    %1367 = vmatprep.subr.mxu0 0.0
    %1368 = vmatpush1.msra.mxu0 0.0
    %1369 = vmatprep.subr.mxu0 0.0
    %1370 = vmatpush1.msra.mxu0 0.0
    %1371 = vmatprep.subr.mxu0 0.0
    %1372 = vmatpush1.msra.mxu0 0.0
    %1373 = vmatprep.subr.mxu0 0.0
    %1374 = vmatpush1.msra.mxu0 0.0
    %1375 = vmatprep.subr.mxu0 0.0
    %1376 = vmatpush1.msra.mxu0 0.0
    %1377 = vmatprep.subr.mxu0 0.0
    %1378 = vmatpush1.msra.mxu0 0.0
    %1379 = vmatprep.subr.mxu0 0.0
    %1380 = vmatpush1.msra.mxu0 0.0
    %1381 = vmatprep.subr.mxu0 0.0
    %1382 = vmatpush1.msra.mxu0 0.0
    %1383 = vmatprep.subr.mxu0 0.0
    %1384 = vmatpush1.msra.mxu0 0.0
    %1385 = vmatprep.mubr.f32.mxu0 0.0
    %1386 = vmatmul.mubr.f32.gmra.mrb[0].mxu0 %v1223
    %v1387 = vpop.f32.mrb[0].mxu0
    %v1388 = vadd.f32 %v1219, %v1387
    %v1389 = vpop.f32.mrb[0].mxu0
    %v1390 = vadd.f32 %v1219, %v1389
    %1391 = vdwg.mxu0
    %1392 = vmatprep.subr.mxu0 %v1242
    %1393 = vmatpush1.msra.mxu0 %v1239
    %1394 = vmatprep.subr.mxu0 0.0
    %1395 = vmatpush1.msra.mxu0 0.0
    %1396 = vmatprep.subr.mxu0 0.0
    %1397 = vmatpush1.msra.mxu0 0.0
    %1398 = vmatprep.subr.mxu0 0.0
    %1399 = vmatpush1.msra.mxu0 0.0
    %1400 = vmatprep.subr.mxu0 0.0
    %1401 = vmatpush1.msra.mxu0 0.0
    %1402 = vmatprep.subr.mxu0 0.0
    %1403 = vmatpush1.msra.mxu0 0.0
    %1404 = vmatprep.subr.mxu0 0.0
    %1405 = vmatpush1.msra.mxu0 0.0
    %1406 = vmatprep.subr.mxu0 0.0
    %1407 = vmatpush1.msra.mxu0 0.0
    %1408 = vmatprep.subr.mxu0 0.0
    %1409 = vmatpush1.msra.mxu0 0.0
    %1410 = vmatprep.subr.mxu0 0.0
    %1411 = vmatpush1.msra.mxu0 0.0
    %1412 = vmatprep.subr.mxu0 0.0
    %1413 = vmatpush1.msra.mxu0 0.0
    %1414 = vmatprep.subr.mxu0 0.0
    %1415 = vmatpush1.msra.mxu0 0.0
    %1416 = vmatprep.subr.mxu0 0.0
    %1417 = vmatpush1.msra.mxu0 0.0
    %1418 = vmatprep.subr.mxu0 0.0
    %1419 = vmatpush1.msra.mxu0 0.0
    %1420 = vmatprep.subr.mxu0 0.0
    %1421 = vmatpush1.msra.mxu0 0.0
    %1422 = vmatprep.subr.mxu0 0.0
    %1423 = vmatpush1.msra.mxu0 0.0
    %1424 = vmatprep.subr.mxu0 0.0
    %1425 = vmatpush1.msra.mxu0 0.0
    %1426 = vmatprep.subr.mxu0 0.0
    %1427 = vmatpush1.msra.mxu0 0.0
    %1428 = vmatprep.subr.mxu0 0.0
    %1429 = vmatpush1.msra.mxu0 0.0
    %1430 = vmatprep.subr.mxu0 0.0
    %1431 = vmatpush1.msra.mxu0 0.0
    %1432 = vmatprep.subr.mxu0 0.0
    %1433 = vmatpush1.msra.mxu0 0.0
    %1434 = vmatprep.subr.mxu0 0.0
    %1435 = vmatpush1.msra.mxu0 0.0
    %1436 = vmatprep.subr.mxu0 0.0
    %1437 = vmatpush1.msra.mxu0 0.0
    %1438 = vmatprep.subr.mxu0 0.0
    %1439 = vmatpush1.msra.mxu0 0.0
    %1440 = vmatprep.subr.mxu0 0.0
    %1441 = vmatpush1.msra.mxu0 0.0
    %1442 = vmatprep.subr.mxu0 0.0
    %1443 = vmatpush1.msra.mxu0 0.0
    %1444 = vmatprep.subr.mxu0 0.0
    %1445 = vmatpush1.msra.mxu0 0.0
    %1446 = vmatprep.subr.mxu0 0.0
    %1447 = vmatpush1.msra.mxu0 0.0
    %1448 = vmatprep.subr.mxu0 0.0
    %1449 = vmatpush1.msra.mxu0 0.0
    %1450 = vmatprep.subr.mxu0 0.0
    %1451 = vmatpush1.msra.mxu0 0.0
    %1452 = vmatprep.subr.mxu0 0.0
    %1453 = vmatpush1.msra.mxu0 0.0
    %1454 = vmatprep.subr.mxu0 0.0
    %1455 = vmatpush1.msra.mxu0 0.0
    %1456 = vmatprep.mubr.f32.mxu0 0.0
    %1457 = vmatmul.mubr.f32.gmra.mrb[0].mxu0 %v1223
    %v1458 = vpop.f32.mrb[0].mxu0
    %v1459 = vadd.f32 %v1219, %v1458
    %v1460 = vpop.f32.mrb[0].mxu0
    %v1461 = vadd.f32 %v1219, %v1460
    %1462 = vdwg.mxu0
    %1463 = vmatprep.subr.mxu0 %v1248
    %1464 = vmatpush1.msra.mxu0 %v1245
    %1465 = vmatprep.subr.mxu0 0.0
    %1466 = vmatpush1.msra.mxu0 0.0
    %1467 = vmatprep.subr.mxu0 0.0
    %1468 = vmatpush1.msra.mxu0 0.0
    %1469 = vmatprep.subr.mxu0 0.0
    %1470 = vmatpush1.msra.mxu0 0.0
    %1471 = vmatprep.subr.mxu0 0.0
    %1472 = vmatpush1.msra.mxu0 0.0
    %1473 = vmatprep.subr.mxu0 0.0
    %1474 = vmatpush1.msra.mxu0 0.0
    %1475 = vmatprep.subr.mxu0 0.0
    %1476 = vmatpush1.msra.mxu0 0.0
    %1477 = vmatprep.subr.mxu0 0.0
    %1478 = vmatpush1.msra.mxu0 0.0
    %1479 = vmatprep.subr.mxu0 0.0
    %1480 = vmatpush1.msra.mxu0 0.0
    %1481 = vmatprep.subr.mxu0 0.0
    %1482 = vmatpush1.msra.mxu0 0.0
    %1483 = vmatprep.subr.mxu0 0.0
    %1484 = vmatpush1.msra.mxu0 0.0
    %1485 = vmatprep.subr.mxu0 0.0
    %1486 = vmatpush1.msra.mxu0 0.0
    %1487 = vmatprep.subr.mxu0 0.0
    %1488 = vmatpush1.msra.mxu0 0.0
    %1489 = vmatprep.subr.mxu0 0.0
    %1490 = vmatpush1.msra.mxu0 0.0
    %1491 = vmatprep.subr.mxu0 0.0
    %1492 = vmatpush1.msra.mxu0 0.0
    %1493 = vmatprep.subr.mxu0 0.0
    %1494 = vmatpush1.msra.mxu0 0.0
    %1495 = vmatprep.subr.mxu0 0.0
    %1496 = vmatpush1.msra.mxu0 0.0
    %1497 = vmatprep.subr.mxu0 0.0
    %1498 = vmatpush1.msra.mxu0 0.0
    %1499 = vmatprep.subr.mxu0 0.0
    %1500 = vmatpush1.msra.mxu0 0.0
    %1501 = vmatprep.subr.mxu0 0.0
    %1502 = vmatpush1.msra.mxu0 0.0
    %1503 = vmatprep.subr.mxu0 0.0
    %1504 = vmatpush1.msra.mxu0 0.0
    %1505 = vmatprep.subr.mxu0 0.0
    %1506 = vmatpush1.msra.mxu0 0.0
    %1507 = vmatprep.subr.mxu0 0.0
    %1508 = vmatpush1.msra.mxu0 0.0
    %1509 = vmatprep.subr.mxu0 0.0
    %1510 = vmatpush1.msra.mxu0 0.0
    %1511 = vmatprep.subr.mxu0 0.0
    %1512 = vmatpush1.msra.mxu0 0.0
    %1513 = vmatprep.subr.mxu0 0.0
    %1514 = vmatpush1.msra.mxu0 0.0
    %1515 = vmatprep.subr.mxu0 0.0
    %1516 = vmatpush1.msra.mxu0 0.0
    %1517 = vmatprep.subr.mxu0 0.0
    %1518 = vmatpush1.msra.mxu0 0.0
    %1519 = vmatprep.subr.mxu0 0.0
    %1520 = vmatpush1.msra.mxu0 0.0
    %1521 = vmatprep.subr.mxu0 0.0
    %1522 = vmatpush1.msra.mxu0 0.0
    %1523 = vmatprep.subr.mxu0 0.0
    %1524 = vmatpush1.msra.mxu0 0.0
    %1525 = vmatprep.subr.mxu0 0.0
    %1526 = vmatpush1.msra.mxu0 0.0
    %1527 = vmatprep.mubr.f32.mxu0 0.0
    %1528 = vmatmul.mubr.f32.gmra.mrb[0].mxu0 %v1223
    %v1529 = vpop.f32.mrb[0].mxu0
    %v1530 = vadd.f32 %v1219, %v1529
    %v1531 = vpop.f32.mrb[0].mxu0
    %v1532 = vadd.f32 %v1219, %v1531
    %1533 = vdwg.mxu0
    %v1534 = vmax.f32 %v1317, 0.0
    %v1535 = vmax.f32 %v1319, 0.0
    %v1536 = vmax.f32 %v1388, 0.0
    %v1537 = vmax.f32 %v1390, 0.0
    %v1538 = vmax.f32 %v1459, 0.0
    %v1539 = vmax.f32 %v1461, 0.0
    %v1540 = vmax.f32 %v1530, 0.0
    %v1541 = vmax.f32 %v1532, 0.0
    %v1542 = vld [vmem:[%s7] sm:$0x1]
    %v1544 = vsel %vm1221, %v1542, 0
    %v1547 = vsel %vm1225, %v1534, 0
    %v1550 = vsel %vm1225, %v1535, 0
    %v1553 = vsel %vm1225, %v1536, 0
    %v1556 = vsel %vm1225, %v1537, 0
    %v1559 = vsel %vm1225, %v1538, 0
    %v1562 = vsel %vm1225, %v1539, 0
    %v1565 = vsel %vm1225, %v1540, 0
    %v1568 = vsel %vm1225, %v1541, 0
    %1570 = vmatprep.subr.mxu0 %v1550
    %1571 = vmatpush1.msra.mxu0 %v1547
    %1572 = vmatprep.subr.mxu0 0.0
    %1573 = vmatpush1.msra.mxu0 0.0
    %1574 = vmatprep.subr.mxu0 0.0
    %1575 = vmatpush1.msra.mxu0 0.0
    %1576 = vmatprep.subr.mxu0 0.0
    %1577 = vmatpush1.msra.mxu0 0.0
    %1578 = vmatprep.subr.mxu0 0.0
    %1579 = vmatpush1.msra.mxu0 0.0
    %1580 = vmatprep.subr.mxu0 0.0
    %1581 = vmatpush1.msra.mxu0 0.0
    %1582 = vmatprep.subr.mxu0 0.0
    %1583 = vmatpush1.msra.mxu0 0.0
    %1584 = vmatprep.subr.mxu0 0.0
    %1585 = vmatpush1.msra.mxu0 0.0
    %1586 = vmatprep.subr.mxu0 0.0
    %1587 = vmatpush1.msra.mxu0 0.0
    %1588 = vmatprep.subr.mxu0 0.0
    %1589 = vmatpush1.msra.mxu0 0.0
    %1590 = vmatprep.subr.mxu0 0.0
    %1591 = vmatpush1.msra.mxu0 0.0
    %1592 = vmatprep.subr.mxu0 0.0
    %1593 = vmatpush1.msra.mxu0 0.0
    %1594 = vmatprep.subr.mxu0 0.0
    %1595 = vmatpush1.msra.mxu0 0.0
    %1596 = vmatprep.subr.mxu0 0.0
    %1597 = vmatpush1.msra.mxu0 0.0
    %1598 = vmatprep.subr.mxu0 0.0
    %1599 = vmatpush1.msra.mxu0 0.0
    %1600 = vmatprep.subr.mxu0 0.0
    %1601 = vmatpush1.msra.mxu0 0.0
    %1602 = vmatprep.subr.mxu0 0.0
    %1603 = vmatpush1.msra.mxu0 0.0
    %1604 = vmatprep.subr.mxu0 0.0
    %1605 = vmatpush1.msra.mxu0 0.0
    %1606 = vmatprep.subr.mxu0 0.0
    %1607 = vmatpush1.msra.mxu0 0.0
    %1608 = vmatprep.subr.mxu0 0.0
    %1609 = vmatpush1.msra.mxu0 0.0
    %1610 = vmatprep.subr.mxu0 0.0
    %1611 = vmatpush1.msra.mxu0 0.0
    %1612 = vmatprep.subr.mxu0 0.0
    %1613 = vmatpush1.msra.mxu0 0.0
    %1614 = vmatprep.subr.mxu0 0.0
    %1615 = vmatpush1.msra.mxu0 0.0
    %1616 = vmatprep.subr.mxu0 0.0
    %1617 = vmatpush1.msra.mxu0 0.0
    %1618 = vmatprep.subr.mxu0 0.0
    %1619 = vmatpush1.msra.mxu0 0.0
    %1620 = vmatprep.subr.mxu0 0.0
    %1621 = vmatpush1.msra.mxu0 0.0
    %1622 = vmatprep.subr.mxu0 0.0
    %1623 = vmatpush1.msra.mxu0 0.0
    %1624 = vmatprep.subr.mxu0 0.0
    %1625 = vmatpush1.msra.mxu0 0.0
    %1626 = vmatprep.subr.mxu0 0.0
    %1627 = vmatpush1.msra.mxu0 0.0
    %1628 = vmatprep.subr.mxu0 0.0
    %1629 = vmatpush1.msra.mxu0 0.0
    %1630 = vmatprep.subr.mxu0 0.0
    %1631 = vmatpush1.msra.mxu0 0.0
    %1632 = vmatprep.subr.mxu0 0.0
    %1633 = vmatpush1.msra.mxu0 0.0
    %1634 = vmatprep.mubr.f32.mxu0 0.0
    %1635 = vmatmul.mubr.f32.gmra.mrb[0].mxu0 %v1544
    %v1636 = vpop.f32.mrb[0].mxu0
    %v1637 = vadd.f32 0.0, %v1636
    %v1638 = vpop.f32.mrb[0].mxu0
    %v1639 = vadd.f32 0.0, %v1638
    %1640 = vdwg.mxu0
    %1641 = vmatprep.subr.mxu0 %v1556
    %1642 = vmatpush1.msra.mxu0 %v1553
    %1643 = vmatprep.subr.mxu0 0.0
    %1644 = vmatpush1.msra.mxu0 0.0
    %1645 = vmatprep.subr.mxu0 0.0
    %1646 = vmatpush1.msra.mxu0 0.0
    %1647 = vmatprep.subr.mxu0 0.0
    %1648 = vmatpush1.msra.mxu0 0.0
    %1649 = vmatprep.subr.mxu0 0.0
    %1650 = vmatpush1.msra.mxu0 0.0
    %1651 = vmatprep.subr.mxu0 0.0
    %1652 = vmatpush1.msra.mxu0 0.0
    %1653 = vmatprep.subr.mxu0 0.0
    %1654 = vmatpush1.msra.mxu0 0.0
    %1655 = vmatprep.subr.mxu0 0.0
    %1656 = vmatpush1.msra.mxu0 0.0
    %1657 = vmatprep.subr.mxu0 0.0
    %1658 = vmatpush1.msra.mxu0 0.0
    %1659 = vmatprep.subr.mxu0 0.0
    %1660 = vmatpush1.msra.mxu0 0.0
    %1661 = vmatprep.subr.mxu0 0.0
    %1662 = vmatpush1.msra.mxu0 0.0
    %1663 = vmatprep.subr.mxu0 0.0
    %1664 = vmatpush1.msra.mxu0 0.0
    %1665 = vmatprep.subr.mxu0 0.0
    %1666 = vmatpush1.msra.mxu0 0.0
    %1667 = vmatprep.subr.mxu0 0.0
    %1668 = vmatpush1.msra.mxu0 0.0
    %1669 = vmatprep.subr.mxu0 0.0
    %1670 = vmatpush1.msra.mxu0 0.0
    %1671 = vmatprep.subr.mxu0 0.0
    %1672 = vmatpush1.msra.mxu0 0.0
    %1673 = vmatprep.subr.mxu0 0.0
    %1674 = vmatpush1.msra.mxu0 0.0
    %1675 = vmatprep.subr.mxu0 0.0
    %1676 = vmatpush1.msra.mxu0 0.0
    %1677 = vmatprep.subr.mxu0 0.0
    %1678 = vmatpush1.msra.mxu0 0.0
    %1679 = vmatprep.subr.mxu0 0.0
    %1680 = vmatpush1.msra.mxu0 0.0
    %1681 = vmatprep.subr.mxu0 0.0
    %1682 = vmatpush1.msra.mxu0 0.0
    %1683 = vmatprep.subr.mxu0 0.0
    %1684 = vmatpush1.msra.mxu0 0.0
    %1685 = vmatprep.subr.mxu0 0.0
    %1686 = vmatpush1.msra.mxu0 0.0
    %1687 = vmatprep.subr.mxu0 0.0
    %1688 = vmatpush1.msra.mxu0 0.0
    %1689 = vmatprep.subr.mxu0 0.0
    %1690 = vmatpush1.msra.mxu0 0.0
    %1691 = vmatprep.subr.mxu0 0.0
    %1692 = vmatpush1.msra.mxu0 0.0
    %1693 = vmatprep.subr.mxu0 0.0
    %1694 = vmatpush1.msra.mxu0 0.0
    %1695 = vmatprep.subr.mxu0 0.0
    %1696 = vmatpush1.msra.mxu0 0.0
    %1697 = vmatprep.subr.mxu0 0.0
    %1698 = vmatpush1.msra.mxu0 0.0
    %1699 = vmatprep.subr.mxu0 0.0
    %1700 = vmatpush1.msra.mxu0 0.0
    %1701 = vmatprep.subr.mxu0 0.0
    %1702 = vmatpush1.msra.mxu0 0.0
    %1703 = vmatprep.subr.mxu0 0.0
    %1704 = vmatpush1.msra.mxu0 0.0
    %1705 = vmatprep.mubr.f32.mxu0 0.0
    %1706 = vmatmul.mubr.f32.gmra.mrb[0].mxu0 %v1544
    %v1707 = vpop.f32.mrb[0].mxu0
    %v1708 = vadd.f32 0.0, %v1707
    %v1709 = vpop.f32.mrb[0].mxu0
    %v1710 = vadd.f32 0.0, %v1709
    %1711 = vdwg.mxu0
    %1712 = vmatprep.subr.mxu0 %v1562
    %1713 = vmatpush1.msra.mxu0 %v1559
    %1714 = vmatprep.subr.mxu0 0.0
    %1715 = vmatpush1.msra.mxu0 0.0
    %1716 = vmatprep.subr.mxu0 0.0
    %1717 = vmatpush1.msra.mxu0 0.0
    %1718 = vmatprep.subr.mxu0 0.0
    %1719 = vmatpush1.msra.mxu0 0.0
    %1720 = vmatprep.subr.mxu0 0.0
    %1721 = vmatpush1.msra.mxu0 0.0
    %1722 = vmatprep.subr.mxu0 0.0
    %1723 = vmatpush1.msra.mxu0 0.0
    %1724 = vmatprep.subr.mxu0 0.0
    %1725 = vmatpush1.msra.mxu0 0.0
    %1726 = vmatprep.subr.mxu0 0.0
    %1727 = vmatpush1.msra.mxu0 0.0
    %1728 = vmatprep.subr.mxu0 0.0
    %1729 = vmatpush1.msra.mxu0 0.0
    %1730 = vmatprep.subr.mxu0 0.0
    %1731 = vmatpush1.msra.mxu0 0.0
    %1732 = vmatprep.subr.mxu0 0.0
    %1733 = vmatpush1.msra.mxu0 0.0
    %1734 = vmatprep.subr.mxu0 0.0
    %1735 = vmatpush1.msra.mxu0 0.0
    %1736 = vmatprep.subr.mxu0 0.0
    %1737 = vmatpush1.msra.mxu0 0.0
    %1738 = vmatprep.subr.mxu0 0.0
    %1739 = vmatpush1.msra.mxu0 0.0
    %1740 = vmatprep.subr.mxu0 0.0
    %1741 = vmatpush1.msra.mxu0 0.0
    %1742 = vmatprep.subr.mxu0 0.0
    %1743 = vmatpush1.msra.mxu0 0.0
    %1744 = vmatprep.subr.mxu0 0.0
    %1745 = vmatpush1.msra.mxu0 0.0
    %1746 = vmatprep.subr.mxu0 0.0
    %1747 = vmatpush1.msra.mxu0 0.0
    %1748 = vmatprep.subr.mxu0 0.0
    %1749 = vmatpush1.msra.mxu0 0.0
    %1750 = vmatprep.subr.mxu0 0.0
    %1751 = vmatpush1.msra.mxu0 0.0
    %1752 = vmatprep.subr.mxu0 0.0
    %1753 = vmatpush1.msra.mxu0 0.0
    %1754 = vmatprep.subr.mxu0 0.0
    %1755 = vmatpush1.msra.mxu0 0.0
    %1756 = vmatprep.subr.mxu0 0.0
    %1757 = vmatpush1.msra.mxu0 0.0
    %1758 = vmatprep.subr.mxu0 0.0
    %1759 = vmatpush1.msra.mxu0 0.0
    %1760 = vmatprep.subr.mxu0 0.0
    %1761 = vmatpush1.msra.mxu0 0.0
    %1762 = vmatprep.subr.mxu0 0.0
    %1763 = vmatpush1.msra.mxu0 0.0
    %1764 = vmatprep.subr.mxu0 0.0
    %1765 = vmatpush1.msra.mxu0 0.0
    %1766 = vmatprep.subr.mxu0 0.0
    %1767 = vmatpush1.msra.mxu0 0.0
    %1768 = vmatprep.subr.mxu0 0.0
    %1769 = vmatpush1.msra.mxu0 0.0
    %1770 = vmatprep.subr.mxu0 0.0
    %1771 = vmatpush1.msra.mxu0 0.0
    %1772 = vmatprep.subr.mxu0 0.0
    %1773 = vmatpush1.msra.mxu0 0.0
    %1774 = vmatprep.subr.mxu0 0.0
    %1775 = vmatpush1.msra.mxu0 0.0
    %1776 = vmatprep.mubr.f32.mxu0 0.0
    %1777 = vmatmul.mubr.f32.gmra.mrb[0].mxu0 %v1544
    %v1778 = vpop.f32.mrb[0].mxu0
    %v1779 = vadd.f32 0.0, %v1778
    %v1780 = vpop.f32.mrb[0].mxu0
    %v1781 = vadd.f32 0.0, %v1780
    %1782 = vdwg.mxu0
    %1783 = vmatprep.subr.mxu0 %v1568
    %1784 = vmatpush1.msra.mxu0 %v1565
    %1785 = vmatprep.subr.mxu0 0.0
    %1786 = vmatpush1.msra.mxu0 0.0
    %1787 = vmatprep.subr.mxu0 0.0
    %1788 = vmatpush1.msra.mxu0 0.0
    %1789 = vmatprep.subr.mxu0 0.0
    %1790 = vmatpush1.msra.mxu0 0.0
    %1791 = vmatprep.subr.mxu0 0.0
    %1792 = vmatpush1.msra.mxu0 0.0
    %1793 = vmatprep.subr.mxu0 0.0
    %1794 = vmatpush1.msra.mxu0 0.0
    %1795 = vmatprep.subr.mxu0 0.0
    %1796 = vmatpush1.msra.mxu0 0.0
    %1797 = vmatprep.subr.mxu0 0.0
    %1798 = vmatpush1.msra.mxu0 0.0
    %1799 = vmatprep.subr.mxu0 0.0
    %1800 = vmatpush1.msra.mxu0 0.0
    %1801 = vmatprep.subr.mxu0 0.0
    %1802 = vmatpush1.msra.mxu0 0.0
    %1803 = vmatprep.subr.mxu0 0.0
    %1804 = vmatpush1.msra.mxu0 0.0
    %1805 = vmatprep.subr.mxu0 0.0
    %1806 = vmatpush1.msra.mxu0 0.0
    %1807 = vmatprep.subr.mxu0 0.0
    %1808 = vmatpush1.msra.mxu0 0.0
    %1809 = vmatprep.subr.mxu0 0.0
    %1810 = vmatpush1.msra.mxu0 0.0
    %1811 = vmatprep.subr.mxu0 0.0
    %1812 = vmatpush1.msra.mxu0 0.0
    %1813 = vmatprep.subr.mxu0 0.0
    %1814 = vmatpush1.msra.mxu0 0.0
    %1815 = vmatprep.subr.mxu0 0.0
    %1816 = vmatpush1.msra.mxu0 0.0
    %1817 = vmatprep.subr.mxu0 0.0
    %1818 = vmatpush1.msra.mxu0 0.0
    %1819 = vmatprep.subr.mxu0 0.0
    %1820 = vmatpush1.msra.mxu0 0.0
    %1821 = vmatprep.subr.mxu0 0.0
    %1822 = vmatpush1.msra.mxu0 0.0
    %1823 = vmatprep.subr.mxu0 0.0
    %1824 = vmatpush1.msra.mxu0 0.0
    %1825 = vmatprep.subr.mxu0 0.0
    %1826 = vmatpush1.msra.mxu0 0.0
    %1827 = vmatprep.subr.mxu0 0.0
    %1828 = vmatpush1.msra.mxu0 0.0
    %1829 = vmatprep.subr.mxu0 0.0
    %1830 = vmatpush1.msra.mxu0 0.0
    %1831 = vmatprep.subr.mxu0 0.0
    %1832 = vmatpush1.msra.mxu0 0.0
    %1833 = vmatprep.subr.mxu0 0.0
    %1834 = vmatpush1.msra.mxu0 0.0
    %1835 = vmatprep.subr.mxu0 0.0
    %1836 = vmatpush1.msra.mxu0 0.0
    %1837 = vmatprep.subr.mxu0 0.0
    %1838 = vmatpush1.msra.mxu0 0.0
    %1839 = vmatprep.subr.mxu0 0.0
    %1840 = vmatpush1.msra.mxu0 0.0
    %1841 = vmatprep.subr.mxu0 0.0
    %1842 = vmatpush1.msra.mxu0 0.0
    %1843 = vmatprep.subr.mxu0 0.0
    %1844 = vmatpush1.msra.mxu0 0.0
    %1845 = vmatprep.subr.mxu0 0.0
    %1846 = vmatpush1.msra.mxu0 0.0
    %1847 = vmatprep.mubr.f32.mxu0 0.0
    %1848 = vmatmul.mubr.f32.gmra.mrb[0].mxu0 %v1544
    %v1849 = vpop.f32.mrb[0].mxu0
    %v1850 = vadd.f32 0.0, %v1849
    %v1851 = vpop.f32.mrb[0].mxu0
    %v1852 = vadd.f32 0.0, %v1851
    %1853 = vdwg.mxu0
    %v1862 = vcombine.low %v1637, %v1639
    %v1863 = vcombine.low %v1708, %v1710
    %v1864 = vcombine.low %v1779, %v1781
    %v1865 = vcombine.low %v1850, %v1852
    %v1867 = vunpack.c.l.s4 1966171168
    %v1868 = vunpack.c.0.s8 %v1867
    %v1869 = vlaneseq
    %v1870 = vshrl.u32 %v1869, 7
    %v1871 = vsub.s32 %v1868, %v1870
    %v1872 = vrot.slane %v1862, %v1871
    %v1874 = vunpack.c.l.s4 1966171168
    %v1875 = vunpack.c.0.s8 %v1874
    %v1876 = vlaneseq
    %v1877 = vshrl.u32 %v1876, 7
    %v1878 = vsub.s32 %v1875, %v1877
    %v1879 = vrot.slane %v1863, %v1878
    %v1881 = vunpack.c.l.s4 1966171168
    %v1882 = vunpack.c.0.s8 %v1881
    %v1883 = vlaneseq
    %v1884 = vshrl.u32 %v1883, 7
    %v1885 = vsub.s32 %v1882, %v1884
    %v1886 = vrot.slane %v1864, %v1885
    %v1888 = vunpack.c.l.s4 1966171168
    %v1889 = vunpack.c.0.s8 %v1888
    %v1890 = vlaneseq
    %v1891 = vshrl.u32 %v1890, 7
    %v1892 = vsub.s32 %v1889, %v1891
    %v1893 = vrot.slane %v1865, %v1892
    %v1894 = vcombine.low %v1872, %v1879
    %v1895 = vcombine.low %v1886, %v1893
    %v1897 = vunpack.c.l.s4 1966171168
    %v1898 = vunpack.c.0.s8 %v1897
    %v1899 = vlaneseq
    %v1900 = vshrl.u32 %v1899, 7
    %v1901 = vsub.s32 %v1898, %v1900
    %v1902 = vrot.slane %v1894, %v1901
    %v1904 = vunpack.c.l.s4 1966171168
    %v1905 = vunpack.c.0.s8 %v1904
    %v1906 = vlaneseq
    %v1907 = vshrl.u32 %v1906, 7
    %v1908 = vsub.s32 %v1905, %v1907
    %v1909 = vrot.slane %v1895, %v1908
    %v1910 = vcombine.low %v1902, %v1909
    %1912 = vst [vmem:[#allocation2] sm:$0xff] %v1910
    // Predicated region
    $region34: #{tpu_custom_call.1} parent=1 // pred_check
      _
    $region35: #{tpu_custom_call.1} parent=1 // pred_check_branch
      %1914 = sbr.rel (0) target = $region37
    $region36: #{tpu_custom_call.1} parent=1 // pred_region
      %s1916 = ssub.s32 128, 128
      %1917 = vsyncadd [#allocation3], %s1916
      %s1919 = sshll.u32 [#allocation2], 4
      %s1920 = int_to_ptr.vmem [resolvable:$true] %s1919
      %1922 = dma.vmem_to_hbm [thread:$0]  %s1920, 128, %s8, [#allocation3]
    $region37: #{tpu_custom_call.1} parent=1 // pred_fallthru
      _
    // Predicated region
    $region38: #{tpu_custom_call.1} parent=1 // pred_check
      _
    $region39: #{tpu_custom_call.1} parent=1 // pred_check_branch
      %1924 = sbr.rel (0) target = $region41
    $region40: #{tpu_custom_call.1} parent=1 // pred_region
      %1925 = dma.done [#allocation3], 128
    $region41: #{tpu_custom_call.1} parent=1 // pred_fallthru
      _
    %1926 = vsyncpa [#allocation3], 1

</llo_original>
